<compile_context>
chip_gen: v7x
topology: tpu7x:2x2x1
jax: 0.10.0
libtpu: 0.0.40
codegen_flags: <defaults>
</compile_context>

<pallas_src>
import functools

import jax
import jax.numpy as jnp
from jax.experimental import pallas as pl
from jax.experimental.pallas import tpu as pltpu

_EPS = 1e-6  # F.pairwise_distance default eps


def _round_up(x, m):
    return ((x + m - 1) // m) * m


def _tpu_defaults():
    """Best-effort device query: (vmem_bytes_per_core, tensorcores_to_split)."""
    vmem_bytes = 64 << 20          # conservative default: v7x per-TC VMEM
    num_cores = 1
    try:
        info = pltpu.get_tpu_info()
        vmem_bytes = int(getattr(info, "vmem_capacity_bytes", vmem_bytes))
    except Exception:
        pass
    try:
        kind = jax.devices()[0].device_kind.lower()
        # v7x has 2 TensorCores per chip (each with its own 64 MiB VMEM) sharing
        # HBM; split the row stream across them with a leading "parallel" axis.
        # v5e/v6e are single-TC: the extra axis would only add a serial loop and
        # duplicated clamped-tile DMAs, so keep it 1-wide there.
        if "v7" in kind:
            num_cores = 2
    except Exception:
        pass
    return vmem_bytes, num_cores


def _contrastive_loss_kernel(x1_ref, x2_ref, lbl_ref, out_ref, acc_ref, *,
                             margin, n_rows):
    core = pl.program_id(0)          # megacore split axis ("parallel")
    step = pl.program_id(1)          # row-tile reduction axis ("arbitrary")
    steps_per_core = pl.num_programs(1)

    # Zero this core's lane-dense partial-sum accumulator at its first step.
    @pl.when(step == 0)
    def _():
        acc_ref[...] = jnp.zeros_like(acc_ref)

    tm, d_feat = x1_ref.shape        # static block shape; tm is a multiple of 128
    g = tm // 128

    x1 = x1_ref[...].astype(jnp.float32)              # (tm, D)
    x2 = x2_ref[...].astype(jnp.float32)              # (tm, D)
    diff = x1 - x2 + jnp.float32(_EPS)                # eps added to the diff (torch)

    # Lane-dense squared distances: fold each group of 128 rows onto the 128
    # lanes.  The reshape only splits the leading (sublane) dim at a 128-row
    # boundary, so the tile layout is preserved; the reduce lands (g, 128).
    sq = (diff * diff).reshape(g, 128, d_feat)
    d2 = jnp.sum(sq, axis=-1)                          # (g, 128) squared distance

    lbl = lbl_ref[0].astype(jnp.float32)               # (g, 128), pre-folded

    d = jnp.sqrt(d2)                                   # EUP slot
    hinge = jnp.maximum(jnp.float32(margin) - d, 0.0)
    per_row = (1.0 - lbl) * d2 + lbl * (hinge * hinge)  # reuse d^2 directly

    # Mask rows past the end of the batch (ragged last tile / clamped padded
    # tile) BEFORE accumulating, so garbage padding never reaches the sum.
    tile_idx = core * steps_per_core + step
    sub = jax.lax.broadcasted_iota(jnp.int32, (g, 128), 0)
    lane = jax.lax.broadcasted_iota(jnp.int32, (g, 128), 1)
    row_ids = tile_idx * tm + sub * 128 + lane
    per_row = jnp.where(row_ids < n_rows, per_row, jnp.float32(0.0))

    acc_ref[...] += per_row                            # dense VALU accumulate

    # Single cross-lane reduce + SMEM store only at the end of this core's work.
    @pl.when(step == steps_per_core - 1)
    def _():
        out_ref[0, 0] = jnp.sum(acc_ref[...])


def contrastive_loss(output1, output2, label, margin=2.0, max_block_rows=None):
    """output1/output2: (N, D) float (bf16 halves streamed HBM bytes; math is f32
    in-kernel); label: (N,). Returns scalar f32 loss."""
    n, d_feat = output1.shape
    assert output2.shape == (n, d_feat)

    itemsize = max(jnp.dtype(output1.dtype).itemsize,
                   jnp.dtype(output2.dtype).itemsize)
    vmem_cap, num_cores_hw = _tpu_defaults()

    # --- Tile sizing by bytes ------------------------------------------------
    # (a) HBM-DMA target: ~2-8 MiB of streamed bytes per input tile saturates
    #     the HBM roofline on v5e/v6e/v7x.
    # (b) VMEM budget: 2 inputs x 2 pipeline buffers of the *lane-padded* tile
    #     (minor dim is padded to 128 lanes in VMEM) must fit ~40% of per-core
    #     VMEM (64 MiB on v7x, 128 MiB on v5e/v6e).
    hbm_row_bytes = d_feat * itemsize
    lane_row_bytes = _round_up(d_feat, 128) * itemsize
    per_tile_target = max(1 << 20, min(8 << 20, vmem_cap // 16))
    vmem_budget = (2 * vmem_cap) // 5

    tm = min(per_tile_target // max(1, hbm_row_bytes),
             vmem_budget // max(1, 4 * lane_row_bytes))
    if max_block_rows is not None:
        tm = min(tm, int(max_block_rows))
    tm = min(tm, _round_up(n, 128))          # don't overshoot small batches
    tm = max(128, (tm // 128) * 128)         # multiple of 128: lane-dense tail,
                                             # covers 8/16/32 sublane packing
    assert tm % 128 == 0

    # If the whole batch fits in one tile, pad the inputs up to the tile
    # (bounded by one tile of bytes; padded rows are masked in the kernel).
    if tm > n:
        pad = tm - n
        output1 = jnp.pad(output1, ((0, pad), (0, 0)))
        output2 = jnp.pad(output2, ((0, pad), (0, 0)))
    n_rows_arr = output1.shape[0]
    total_tiles = (n_rows_arr + tm - 1) // tm

    num_cores = num_cores_hw if total_tiles >= 2 else 1
    tiles_per_core = (total_tiles + num_cores - 1) // num_cores

    g = tm // 128
    # Label: pad to whole tiles and fold rows onto lanes -> (tiles, g, 128), so
    # the label tile is lane-dense too (no (tm,1) 128x VMEM bloat).
    lbl = label.reshape(-1).astype(jnp.float32)
    lbl = jnp.pad(lbl, (0, total_tiles * tm - n))
    lbl = lbl.reshape(total_tiles, g, 128)

    def xy_map(c, i):
        blk = c * tiles_per_core + i
        # Clamp padded tiles (core imbalance) onto the last valid tile; their
        # contribution is masked to zero inside the kernel.
        return (jnp.minimum(blk, total_tiles - 1), 0)

    def lbl_map(c, i):
        blk = c * tiles_per_core + i
        return (jnp.minimum(blk, total_tiles - 1), 0, 0)

    kernel = functools.partial(_contrastive_loss_kernel,
                               margin=float(margin), n_rows=n)

    tile_vmem = tm * lane_row_bytes
    small = g * 128 * 4
    needed = 4 * tile_vmem + 4 * small + (2 << 20)
    vmem_limit = int(min(max(needed + (8 << 20), 32 << 20), (3 * vmem_cap) // 4))

    cost = pl.CostEstimate(
        flops=int(n) * (4 * d_feat + 10),
        transcendentals=int(n),
        bytes_accessed=2 * int(n) * d_feat * itemsize + 4 * int(n) + 4 * num_cores,
    )

    partials = pl.pallas_call(
        kernel,
        out_shape=jax.ShapeDtypeStruct((num_cores, 1), jnp.float32),
        grid_spec=pltpu.PrefetchScalarGridSpec(
            num_scalar_prefetch=0,
            grid=(num_cores, tiles_per_core),
            in_specs=[
                pl.BlockSpec((tm, d_feat), xy_map),
                pl.BlockSpec((tm, d_feat), xy_map),
                pl.BlockSpec((1, g, 128), lbl_map),
            ],
            out_specs=pl.BlockSpec((1, 1), lambda c, i: (c, 0),
                                   memory_space=pltpu.SMEM),
            scratch_shapes=[pltpu.VMEM((g, 128), jnp.float32)],
        ),
        compiler_params=pltpu.CompilerParams(
            dimension_semantics=("parallel", "arbitrary"),
            vmem_limit_bytes=vmem_limit),
        cost_estimate=cost,
    )(output1, output2, lbl)

    return jnp.sum(partials) / jnp.float32(n)


def _reference_loss(output1, output2, label, margin=2.0):
    # Pure-JAX reference mirroring the PyTorch module.
    diff = output1.astype(jnp.float32) - output2.astype(jnp.float32) + _EPS
    d = jnp.sqrt(jnp.sum(diff * diff, axis=-1))
    lbl = label.astype(jnp.float32)
    return jnp.mean((1.0 - lbl) * d**2 + lbl * jnp.maximum(margin - d, 0.0) ** 2)


if __name__ == "__main__":
    key = jax.random.PRNGKey(0)
    k1, k2, k3 = jax.random.split(key, 3)

    # Small siamese-embedding shapes: batch=8, hidden=32 (single padded tile).
    N, D = 8, 32
    x1 = jax.random.normal(k1, (N, D), dtype=jnp.float32)
    x2 = jax.random.normal(k2, (N, D), dtype=jnp.float32)
    label = jax.random.bernoulli(k3, p=0.5, shape=(N,)).astype(jnp.float32)

    loss = jax.block_until_ready(contrastive_loss(x1, x2, label, margin=2.0))
    ref = _reference_loss(x1, x2, label, margin=2.0)
    assert jnp.allclose(loss, ref, rtol=1e-5, atol=1e-5), (loss, ref)

    # Multi-tile ragged/masked path with bf16 inputs (3 row tiles, ragged last).
    k4, k5, k6 = jax.random.split(jax.random.PRNGKey(1), 3)
    N2, D2 = 300, 32
    y1 = jax.random.normal(k4, (N2, D2), dtype=jnp.bfloat16)
    y2 = jax.random.normal(k5, (N2, D2), dtype=jnp.bfloat16)
    lab2 = jax.random.bernoulli(k6, p=0.5, shape=(N2,)).astype(jnp.float32)
    loss2 = jax.block_until_ready(
        contrastive_loss(y1, y2, lab2, margin=2.0, max_block_rows=128))
    ref2 = _reference_loss(y1, y2, lab2, margin=2.0)
    assert jnp.allclose(loss2, ref2, rtol=1e-4, atol=1e-4), (loss2, ref2)

    print("KERNEL_OK")
</pallas_src>

<mosaic_0001>
module attributes {stable_mosaic.version = 11 : i64} {
  func.func @_contrastive_loss_kernel(%arg0: i32, %arg1: i32, %arg2: memref<128x32xf32, #tpu.memory_space<vmem>>, %arg3: memref<128x32xf32, #tpu.memory_space<vmem>>, %arg4: memref<1x1x128xf32, #tpu.memory_space<vmem>>, %arg5: memref<1x1xf32, #tpu.memory_space<smem>>, %arg6: memref<1x128xf32, #tpu.memory_space<vmem>>) attributes {dimension_semantics = [#tpu.dimension_semantics<parallel>, #tpu.dimension_semantics<arbitrary>], iteration_bounds = array<i64: 1, 1>, scalar_prefetch = 0 : i64, scratch_operands = 1 : i64, tpu.core_type = #tpu.core_type<tc>, window_params = [{transform_indices = @transform_0, window_bounds = array<i64: 128, 32>}, {transform_indices = @transform_1, window_bounds = array<i64: 128, 32>}, {transform_indices = @transform_2, window_bounds = array<i64: 1, 1, 128>}, {transform_indices = @transform_3, window_bounds = array<i64: 1, 1>}]} {
    %c0_i32 = arith.constant 0 : i32
    %0 = arith.cmpi eq, %arg1, %c0_i32 : i32
    %1 = arith.extui %0 : i1 to i32
    %c0_i32_0 = arith.constant 0 : i32
    %2 = arith.cmpi ne, %1, %c0_i32_0 : i32
    scf.if %2 {
      %cst_19 = arith.constant 0.000000e+00 : f32
      %44 = vector.broadcast %cst_19 : f32 to vector<1x128xf32>
      %c0_20 = arith.constant 0 : index
      %c0_21 = arith.constant 0 : index
      %45 = vector.load %arg6[%c0_20, %c0_21] : memref<1x128xf32, #tpu.memory_space<vmem>>, vector<1x128xf32>
      tpu.vector_store %arg6[%c0_20, %c0_21], %44 {strides = array<i32>} : memref<1x128xf32, #tpu.memory_space<vmem>>, vector<1x128xf32>,
    } else {
    }
    %c0 = arith.constant 0 : index
    %c0_1 = arith.constant 0 : index
    %3 = vector.load %arg2[%c0, %c0_1] : memref<128x32xf32, #tpu.memory_space<vmem>>, vector<128x32xf32>
    %c0_2 = arith.constant 0 : index
    %c0_3 = arith.constant 0 : index
    %4 = vector.load %arg3[%c0_2, %c0_3] : memref<128x32xf32, #tpu.memory_space<vmem>>, vector<128x32xf32>
    %5 = arith.subf %3, %4 : vector<128x32xf32>
    %cst = arith.constant 9.99999997E-7 : f32
    %6 = vector.broadcast %cst : f32 to vector<128x32xf32>
    %7 = arith.addf %5, %6 : vector<128x32xf32>
    %8 = arith.mulf %7, %7 : vector<128x32xf32>
    %9 = vector.shape_cast %8 : vector<128x32xf32> to vector<1x128x32xf32>
    %cst_4 = arith.constant dense<0.000000e+00> : vector<1x128xf32>
    %10 = vector.multi_reduction <add>, %9, %cst_4 [2] : vector<1x128x32xf32> to vector<1x128xf32>
    %c0_5 = arith.constant 0 : index
    %c0_6 = arith.constant 0 : index
    %c0_7 = arith.constant 0 : index
    %11 = vector.load %arg4[%c0_5, %c0_6, %c0_7] : memref<1x1x128xf32, #tpu.memory_space<vmem>>, vector<1x1x128xf32>
    %12 = vector.shape_cast %11 : vector<1x1x128xf32> to vector<1x128xf32>
    %13 = math.sqrt %10 : vector<1x128xf32>
    %cst_8 = arith.constant 2.000000e+00 : f32
    %14 = vector.broadcast %cst_8 : f32 to vector<1x128xf32>
    %15 = arith.subf %14, %13 : vector<1x128xf32>
    %cst_9 = arith.constant 0.000000e+00 : f32
    %16 = vector.broadcast %cst_9 : f32 to vector<1x128xf32>
    %17 = arith.maximumf %15, %16 : vector<1x128xf32>
    %cst_10 = arith.constant 1.000000e+00 : f32
    %18 = vector.broadcast %cst_10 : f32 to vector<1x128xf32>
    %19 = arith.subf %18, %12 : vector<1x128xf32>
    %20 = arith.mulf %19, %10 : vector<1x128xf32>
    %21 = arith.mulf %17, %17 : vector<1x128xf32>
    %22 = arith.mulf %12, %21 : vector<1x128xf32>
    %23 = arith.addf %20, %22 : vector<1x128xf32>
    %c1_i32 = arith.constant 1 : i32
    %24 = arith.muli %arg0, %c1_i32 : i32
    %25 = arith.addi %24, %arg1 : i32
    %26 = tpu.iota {dimensions = array<i32: 0>} : vector<1x128xi32>
    %27 = tpu.iota {dimensions = array<i32: 1>} : vector<1x128xi32>
    %c128_i32 = arith.constant 128 : i32
    %28 = arith.muli %25, %c128_i32 : i32
    %c128_i32_11 = arith.constant 128 : i32
    %29 = vector.broadcast %c128_i32_11 : i32 to vector<1x128xi32>
    %30 = arith.muli %26, %29 : vector<1x128xi32>
    %31 = vector.broadcast %28 : i32 to vector<1x128xi32>
    %32 = arith.addi %31, %30 : vector<1x128xi32>
    %33 = arith.addi %32, %27 : vector<1x128xi32>
    %c8_i32 = arith.constant 8 : i32
    %34 = vector.broadcast %c8_i32 : i32 to vector<1x128xi32>
    %35 = arith.cmpi slt, %33, %34 : vector<1x128xi32>
    %cst_12 = arith.constant 0.000000e+00 : f32
    %36 = vector.broadcast %cst_12 : f32 to vector<1x128xf32>
    %37 = arith.select %35, %23, %36 : vector<1x128xi1>, vector<1x128xf32>
    %c0_13 = arith.constant 0 : index
    %c0_14 = arith.constant 0 : index
    %38 = vector.load %arg6[%c0_13, %c0_14] : memref<1x128xf32, #tpu.memory_space<vmem>>, vector<1x128xf32>
    %39 = arith.addf %38, %37 : vector<1x128xf32>
    %c0_15 = arith.constant 0 : index
    %c0_16 = arith.constant 0 : index
    %40 = vector.load %arg6[%c0_15, %c0_16] : memref<1x128xf32, #tpu.memory_space<vmem>>, vector<1x128xf32>
    tpu.vector_store %arg6[%c0_15, %c0_16], %39 {strides = array<i32>} : memref<1x128xf32, #tpu.memory_space<vmem>>, vector<1x128xf32>,
    %c0_i32_17 = arith.constant 0 : i32
    %41 = arith.cmpi eq, %arg1, %c0_i32_17 : i32
    %42 = arith.extui %41 : i1 to i32
    %c0_i32_18 = arith.constant 0 : i32
    %43 = arith.cmpi ne, %42, %c0_i32_18 : i32
    scf.if %43 {
      %c0_19 = arith.constant 0 : index
      %c0_20 = arith.constant 0 : index
      %44 = vector.load %arg6[%c0_19, %c0_20] : memref<1x128xf32, #tpu.memory_space<vmem>>, vector<1x128xf32>
      %45 = vector.shape_cast %44 : vector<1x128xf32> to vector<1x1x128xf32>
      %cst_21 = arith.constant dense<0.000000e+00> : vector<1xf32>
      %46 = vector.multi_reduction <add>, %45, %cst_21 [1, 2] : vector<1x1x128xf32> to vector<1xf32>
      %47 = vector.shape_cast %46 : vector<1xf32> to vector<1x1x1xf32>
      %48 = vector.extract %47[0, 0, 0] : f32 from vector<1x1x1xf32>
      %c0_22 = arith.constant 0 : index
      %c0_23 = arith.constant 0 : index
      %49 = memref.load %arg5[%c0_22, %c0_23] : memref<1x1xf32, #tpu.memory_space<smem>>
      memref.store %48, %arg5[%c0_22, %c0_23] : memref<1x1xf32, #tpu.memory_space<smem>>
    } else {
    }
    return
  }
  func.func @transform_0(%arg0: i32, %arg1: i32) -> (i32, i32) {
    %c1_i32 = arith.constant 1 : i32
    %0 = arith.muli %arg0, %c1_i32 : i32
    %1 = arith.addi %0, %arg1 : i32
    %c0_i32 = arith.constant 0 : i32
    %2 = arith.minsi %1, %c0_i32 : i32
    %c0_i32_0 = arith.constant 0 : i32
    %c0_i32_1 = arith.constant 0 : i32
    return %2, %c0_i32_0 : i32, i32
  }
  func.func @transform_1(%arg0: i32, %arg1: i32) -> (i32, i32) {
    %c1_i32 = arith.constant 1 : i32
    %0 = arith.muli %arg0, %c1_i32 : i32
    %1 = arith.addi %0, %arg1 : i32
    %c0_i32 = arith.constant 0 : i32
    %2 = arith.minsi %1, %c0_i32 : i32
    %c0_i32_0 = arith.constant 0 : i32
    %c0_i32_1 = arith.constant 0 : i32
    return %2, %c0_i32_0 : i32, i32
  }
  func.func @transform_2(%arg0: i32, %arg1: i32) -> (i32, i32, i32) {
    %c1_i32 = arith.constant 1 : i32
    %0 = arith.muli %arg0, %c1_i32 : i32
    %1 = arith.addi %0, %arg1 : i32
    %c0_i32 = arith.constant 0 : i32
    %2 = arith.minsi %1, %c0_i32 : i32
    %c0_i32_0 = arith.constant 0 : i32
    %c0_i32_1 = arith.constant 0 : i32
    %c0_i32_2 = arith.constant 0 : i32
    return %2, %c0_i32_0, %c0_i32_1 : i32, i32, i32
  }
  func.func @transform_3(%arg0: i32, %arg1: i32) -> (i32, i32) {
    %c0_i32 = arith.constant 0 : i32
    %c0_i32_0 = arith.constant 0 : i32
    return %arg0, %c0_i32 : i32, i32
  }
}

</mosaic_0001>

<llo_original>
// kernel: tpu_custom_call.1
$region0: #{tpu_custom_call.1}
  #allocation0 [shape = 'u32[]', space=smem, size = 0x4, offset = 0x4, fixed_abs, tag = 'smem constant byte address 0x4 - core index']
  #allocation1 [shape = 'u32[144,128]{1,0:T(1,128)}', space=vmem, size = 0x12000, scoped, tag = 'internal scratch']
  #allocation2 [shape = 'f32[1,128]{1,0:T(1,128)}', space=vmem, size = 0x200, scoped, tag = 'scratch operand']
  %s0 = inlined_call_operand.vmem [shape: f32[128,32], index: 0, kind: input, shape index: {}]
  %s1 = inlined_call_operand.vmem [shape: f32[128,32], index: 1, kind: input, shape index: {}]
  %s2 = inlined_call_operand.vmem [shape: f32[1,1,128], index: 2, kind: input, shape index: {}]
  %s3 = inlined_call_operand.hbm [shape: f32[1,1], index: 3, kind: output, shape index: {}]
  %s4 = sld [smem:[#allocation0]]
  $region30: #{tpu_custom_call.1} parent=0
    _
  %s6 = ssub.s32 1, %s4
  %s7 = scalar_select 0, %s6, %s4
  $region1: #{tpu_custom_call.1} parent=0
    #allocation3 [shape = 'u8[512]{0}', space=smem, size = 0x200, scoped, tag = 'output window, operand 0, single buffered']
    #allocation4 [shape = 's32[1]{0}', space=sflag, size = 0x4, scoped, tag = 'scoped memory for tpu_custom_call.1']
    %8 = vsyncpa [#allocation4], 0
    // Predicated region
    $region2: #{tpu_custom_call.1} parent=1 // pred_check
      _
    $region3: #{tpu_custom_call.1} parent=1 // pred_check_branch
      %10 = sbr.rel (0) target = $region5
    $region4: #{tpu_custom_call.1} parent=1 // pred_region
      %s11 = sadd.s32 0, 0
      %p12 = scmp.lt.s32.totalorder %s11, 0
      %s13 = scalar_select %p12, %s11, 0
      %s14 = smul.u32 16, %s13
      %p15 = scmp.lt.s32.totalorder %s14, 15
      %s16 = scalar_select %p15, %s14, 15
      %s17 = smul.addr %s16, 8
      %s18 = scalar_lea.vmem %s0, %s17
      %s19 = sadd.s32 0, 0
      %p20 = scmp.lt.s32.totalorder %s19, 0
      %s21 = scalar_select %p20, %s19, 0
      %s22 = smul.u32 16, %s21
    $region5: #{tpu_custom_call.1} parent=1 // pred_fallthru
      _
    // Predicated region
    $region6: #{tpu_custom_call.1} parent=1 // pred_check
      _
    $region7: #{tpu_custom_call.1} parent=1 // pred_check_branch
      %24 = sbr.rel (0) target = $region9
    $region8: #{tpu_custom_call.1} parent=1 // pred_region
      %s25 = sadd.s32 0, 0
      %p26 = scmp.lt.s32.totalorder %s25, 0
      %s27 = scalar_select %p26, %s25, 0
      %s28 = smul.u32 16, %s27
      %p29 = scmp.lt.s32.totalorder %s28, 15
      %s30 = scalar_select %p29, %s28, 15
      %s31 = smul.addr %s30, 8
      %s32 = scalar_lea.vmem %s1, %s31
      %s33 = sadd.s32 0, 0
      %p34 = scmp.lt.s32.totalorder %s33, 0
      %s35 = scalar_select %p34, %s33, 0
      %s36 = smul.u32 16, %s35
    $region9: #{tpu_custom_call.1} parent=1 // pred_fallthru
      _
    // Predicated region
    $region10: #{tpu_custom_call.1} parent=1 // pred_check
      _
    $region11: #{tpu_custom_call.1} parent=1 // pred_check_branch
      %38 = sbr.rel (0) target = $region13
    $region12: #{tpu_custom_call.1} parent=1 // pred_region
      %s39 = sadd.s32 0, 0
      %p40 = scmp.lt.s32.totalorder %s39, 0
      %s41 = scalar_select %p40, %s39, 0
      %p42 = scmp.lt.s32.totalorder %s41, 0
      %s43 = scalar_select %p42, %s41, 0
      %s44 = scalar_lea.vmem %s2, %s43
      %s45 = sadd.s32 0, 0
      %p46 = scmp.lt.s32.totalorder %s45, 0
      %s47 = scalar_select %p46, %s45, 0
    $region13: #{tpu_custom_call.1} parent=1 // pred_fallthru
      _
    %s48 = sadd.s32 0, 0
    %p49 = scmp.lt.s32.totalorder %s48, 0
    %s50 = scalar_select %p49, %s48, 0
    %s51 = smul.u32 16, %s50
    %p52 = scmp.lt.s32.totalorder %s51, 15
    %s53 = scalar_select %p52, %s51, 15
    %s54 = smul.addr %s53, 8
    %s55 = scalar_lea.vmem %s0, %s54
    %s56 = sadd.s32 0, 0
    %p57 = scmp.lt.s32.totalorder %s56, 0
    %s58 = scalar_select %p57, %s56, 0
    %s59 = smul.u32 16, %s58
    %p60 = scmp.lt.s32.totalorder %s59, 15
    %s61 = scalar_select %p60, %s59, 15
    %s62 = smul.addr %s61, 8
    %s63 = scalar_lea.vmem %s1, %s62
    %s64 = sadd.s32 0, 0
    %p65 = scmp.lt.s32.totalorder %s64, 0
    %s66 = scalar_select %p65, %s64, 0
    %p67 = scmp.lt.s32.totalorder %s66, 0
    %s68 = scalar_select %p67, %s66, 0
    %s69 = scalar_lea.vmem %s2, %s68
    %s70 = sadd.s32 0, 0
    %p71 = scmp.lt.s32.totalorder %s70, 0
    %s72 = scalar_select %p71, %s70, 0
    %s73 = smul.u32 16, %s72
    %p74 = scmp.lt.s32.totalorder %s73, 15
    %s75 = scalar_select %p74, %s73, 15
    %s76 = smul.addr %s75, 8
    %s77 = scalar_lea.vmem %s0, %s76
    %s78 = sadd.s32 0, 0
    %p79 = scmp.lt.s32.totalorder %s78, 0
    %s80 = scalar_select %p79, %s78, 0
    %s81 = smul.u32 16, %s80
    %s82 = sadd.s32 0, 0
    %p83 = scmp.lt.s32.totalorder %s82, 0
    %s84 = scalar_select %p83, %s82, 0
    %s85 = smul.u32 16, %s84
    %p86 = scmp.lt.s32.totalorder %s85, 15
    %s87 = scalar_select %p86, %s85, 15
    %s88 = smul.addr %s87, 8
    %s89 = scalar_lea.vmem %s1, %s88
    %s90 = sadd.s32 0, 0
    %p91 = scmp.lt.s32.totalorder %s90, 0
    %s92 = scalar_select %p91, %s90, 0
    %s93 = smul.u32 16, %s92
    %s94 = sadd.s32 0, 0
    %p95 = scmp.lt.s32.totalorder %s94, 0
    %s96 = scalar_select %p95, %s94, 0
    %p97 = scmp.lt.s32.totalorder %s96, 0
    %s98 = scalar_select %p97, %s96, 0
    %s99 = scalar_lea.vmem %s2, %s98
    %s100 = sadd.s32 0, 0
    %p101 = scmp.lt.s32.totalorder %s100, 0
    %s102 = scalar_select %p101, %s100, 0
    %p103 = scmp.eq.s32.totalorder 0, 0
    // Predicated region
    $region14: #{tpu_custom_call.1} parent=1 // pred_check
      %p104 = pneg %p103
    $region15: #{tpu_custom_call.1} parent=1 // pred_check_branch
      %106 = sbr.rel (%p104) target = $region17
    $region16: #{tpu_custom_call.1} parent=1 // pred_region
      %107 = vst [vmem:[#allocation2] sm:$0x1] 0.0
    $region17: #{tpu_custom_call.1} parent=1 // pred_fallthru
      _
    %v108 = vld [vmem:[%s77] sm:$0xff]
    %v109 = vld [vmem:[%s77 + $0x8] sm:$0xff]
    %v110 = vld [vmem:[%s77 + $0x10] sm:$0xff]
    %v111 = vld [vmem:[%s77 + $0x18] sm:$0xff]
    %v112 = vld [vmem:[%s77 + $0x20] sm:$0xff]
    %v113 = vld [vmem:[%s77 + $0x28] sm:$0xff]
    %v114 = vld [vmem:[%s77 + $0x30] sm:$0xff]
    %v115 = vld [vmem:[%s77 + $0x38] sm:$0xff]
    %v116 = vld [vmem:[%s77 + $0x40] sm:$0xff]
    %v117 = vld [vmem:[%s77 + $0x48] sm:$0xff]
    %v118 = vld [vmem:[%s77 + $0x50] sm:$0xff]
    %v119 = vld [vmem:[%s77 + $0x58] sm:$0xff]
    %v120 = vld [vmem:[%s77 + $0x60] sm:$0xff]
    %v121 = vld [vmem:[%s77 + $0x68] sm:$0xff]
    %v122 = vld [vmem:[%s77 + $0x70] sm:$0xff]
    %v123 = vld [vmem:[%s77 + $0x78] sm:$0xff]
    %v124 = vld [vmem:[%s89] sm:$0xff]
    %v125 = vld [vmem:[%s89 + $0x8] sm:$0xff]
    %v126 = vld [vmem:[%s89 + $0x10] sm:$0xff]
    %v127 = vld [vmem:[%s89 + $0x18] sm:$0xff]
    %v128 = vld [vmem:[%s89 + $0x20] sm:$0xff]
    %v129 = vld [vmem:[%s89 + $0x28] sm:$0xff]
    %v130 = vld [vmem:[%s89 + $0x30] sm:$0xff]
    %v131 = vld [vmem:[%s89 + $0x38] sm:$0xff]
    %v132 = vld [vmem:[%s89 + $0x40] sm:$0xff]
    %v133 = vld [vmem:[%s89 + $0x48] sm:$0xff]
    %v134 = vld [vmem:[%s89 + $0x50] sm:$0xff]
    %v135 = vld [vmem:[%s89 + $0x58] sm:$0xff]
    %v136 = vld [vmem:[%s89 + $0x60] sm:$0xff]
    %v137 = vld [vmem:[%s89 + $0x68] sm:$0xff]
    %v138 = vld [vmem:[%s89 + $0x70] sm:$0xff]
    %v139 = vld [vmem:[%s89 + $0x78] sm:$0xff]
    %v140 = vsub.f32 %v108, %v124
    %v141 = vsub.f32 %v109, %v125
    %v142 = vsub.f32 %v110, %v126
    %v143 = vsub.f32 %v111, %v127
    %v144 = vsub.f32 %v112, %v128
    %v145 = vsub.f32 %v113, %v129
    %v146 = vsub.f32 %v114, %v130
    %v147 = vsub.f32 %v115, %v131
    %v148 = vsub.f32 %v116, %v132
    %v149 = vsub.f32 %v117, %v133
    %v150 = vsub.f32 %v118, %v134
    %v151 = vsub.f32 %v119, %v135
    %v152 = vsub.f32 %v120, %v136
    %v153 = vsub.f32 %v121, %v137
    %v154 = vsub.f32 %v122, %v138
    %v155 = vsub.f32 %v123, %v139
    %v156 = vadd.f32 %v140, 1e-06
    %v157 = vadd.f32 %v141, 1e-06
    %v158 = vadd.f32 %v142, 1e-06
    %v159 = vadd.f32 %v143, 1e-06
    %v160 = vadd.f32 %v144, 1e-06
    %v161 = vadd.f32 %v145, 1e-06
    %v162 = vadd.f32 %v146, 1e-06
    %v163 = vadd.f32 %v147, 1e-06
    %v164 = vadd.f32 %v148, 1e-06
    %v165 = vadd.f32 %v149, 1e-06
    %v166 = vadd.f32 %v150, 1e-06
    %v167 = vadd.f32 %v151, 1e-06
    %v168 = vadd.f32 %v152, 1e-06
    %v169 = vadd.f32 %v153, 1e-06
    %v170 = vadd.f32 %v154, 1e-06
    %v171 = vadd.f32 %v155, 1e-06
    %v172 = vmul.f32 %v156, %v156
    %v173 = vmul.f32 %v157, %v157
    %v174 = vmul.f32 %v158, %v158
    %v175 = vmul.f32 %v159, %v159
    %v176 = vmul.f32 %v160, %v160
    %v177 = vmul.f32 %v161, %v161
    %v178 = vmul.f32 %v162, %v162
    %v179 = vmul.f32 %v163, %v163
    %v180 = vmul.f32 %v164, %v164
    %v181 = vmul.f32 %v165, %v165
    %v182 = vmul.f32 %v166, %v166
    %v183 = vmul.f32 %v167, %v167
    %v184 = vmul.f32 %v168, %v168
    %v185 = vmul.f32 %v169, %v169
    %v186 = vmul.f32 %v170, %v170
    %v187 = vmul.f32 %v171, %v171
    %vm188 = vcmask 261120
    %v189 = vsel %vm188, %v172, 0.0
    %190 = vadd.xlane.f32.xlu0 %v189
    %v191 = vpop.xlane.xlu0 %190
    %v192 = vsel %vm188, %v173, 0.0
    %193 = vadd.xlane.f32.xlu0 %v192
    %v194 = vpop.xlane.xlu0 %193
    %v195 = vsel %vm188, %v174, 0.0
    %196 = vadd.xlane.f32.xlu0 %v195
    %v197 = vpop.xlane.xlu0 %196
    %v198 = vsel %vm188, %v175, 0.0
    %199 = vadd.xlane.f32.xlu0 %v198
    %v200 = vpop.xlane.xlu0 %199
    %v201 = vsel %vm188, %v176, 0.0
    %202 = vadd.xlane.f32.xlu0 %v201
    %v203 = vpop.xlane.xlu0 %202
    %v204 = vsel %vm188, %v177, 0.0
    %205 = vadd.xlane.f32.xlu0 %v204
    %v206 = vpop.xlane.xlu0 %205
    %v207 = vsel %vm188, %v178, 0.0
    %208 = vadd.xlane.f32.xlu0 %v207
    %v209 = vpop.xlane.xlu0 %208
    %v210 = vsel %vm188, %v179, 0.0
    %211 = vadd.xlane.f32.xlu0 %v210
    %v212 = vpop.xlane.xlu0 %211
    %v213 = vsel %vm188, %v180, 0.0
    %214 = vadd.xlane.f32.xlu0 %v213
    %v215 = vpop.xlane.xlu0 %214
    %v216 = vsel %vm188, %v181, 0.0
    %217 = vadd.xlane.f32.xlu0 %v216
    %v218 = vpop.xlane.xlu0 %217
    %v219 = vsel %vm188, %v182, 0.0
    %220 = vadd.xlane.f32.xlu0 %v219
    %v221 = vpop.xlane.xlu0 %220
    %v222 = vsel %vm188, %v183, 0.0
    %223 = vadd.xlane.f32.xlu0 %v222
    %v224 = vpop.xlane.xlu0 %223
    %v225 = vsel %vm188, %v184, 0.0
    %226 = vadd.xlane.f32.xlu0 %v225
    %v227 = vpop.xlane.xlu0 %226
    %v228 = vsel %vm188, %v185, 0.0
    %229 = vadd.xlane.f32.xlu0 %v228
    %v230 = vpop.xlane.xlu0 %229
    %v231 = vsel %vm188, %v186, 0.0
    %232 = vadd.xlane.f32.xlu0 %v231
    %v233 = vpop.xlane.xlu0 %232
    %v234 = vsel %vm188, %v187, 0.0
    %235 = vadd.xlane.f32.xlu0 %v234
    %v236 = vpop.xlane.xlu0 %235
    %v237 = vld [vmem:[%s99] sm:$0x1]
    %v238 = vrsqrt.pop %v191
    %v239 = vmul.f32 %v191, %v238
    %vm240 = vcmp.eq.f32.partialorder %v191, inf
    %v241 = vsel %vm240, %v191, %v239
    %vm242 = vcmp.eq.f32.partialorder %v191, 0.0
    %v243 = vand.u32 %v191, 2147483648
    %v244 = vsel %vm242, %v243, %v241
    %v245 = vrsqrt.pop %v194
    %v246 = vmul.f32 %v194, %v245
    %vm247 = vcmp.eq.f32.partialorder %v194, inf
    %v248 = vsel %vm247, %v194, %v246
    %vm249 = vcmp.eq.f32.partialorder %v194, 0.0
    %v250 = vand.u32 %v194, 2147483648
    %v251 = vsel %vm249, %v250, %v248
    %v252 = vrsqrt.pop %v197
    %v253 = vmul.f32 %v197, %v252
    %vm254 = vcmp.eq.f32.partialorder %v197, inf
    %v255 = vsel %vm254, %v197, %v253
    %vm256 = vcmp.eq.f32.partialorder %v197, 0.0
    %v257 = vand.u32 %v197, 2147483648
    %v258 = vsel %vm256, %v257, %v255
    %v259 = vrsqrt.pop %v200
    %v260 = vmul.f32 %v200, %v259
    %vm261 = vcmp.eq.f32.partialorder %v200, inf
    %v262 = vsel %vm261, %v200, %v260
    %vm263 = vcmp.eq.f32.partialorder %v200, 0.0
    %v264 = vand.u32 %v200, 2147483648
    %v265 = vsel %vm263, %v264, %v262
    %v266 = vrsqrt.pop %v203
    %v267 = vmul.f32 %v203, %v266
    %vm268 = vcmp.eq.f32.partialorder %v203, inf
    %v269 = vsel %vm268, %v203, %v267
    %vm270 = vcmp.eq.f32.partialorder %v203, 0.0
    %v271 = vand.u32 %v203, 2147483648
    %v272 = vsel %vm270, %v271, %v269
    %v273 = vrsqrt.pop %v206
    %v274 = vmul.f32 %v206, %v273
    %vm275 = vcmp.eq.f32.partialorder %v206, inf
    %v276 = vsel %vm275, %v206, %v274
    %vm277 = vcmp.eq.f32.partialorder %v206, 0.0
    %v278 = vand.u32 %v206, 2147483648
    %v279 = vsel %vm277, %v278, %v276
    %v280 = vrsqrt.pop %v209
    %v281 = vmul.f32 %v209, %v280
    %vm282 = vcmp.eq.f32.partialorder %v209, inf
    %v283 = vsel %vm282, %v209, %v281
    %vm284 = vcmp.eq.f32.partialorder %v209, 0.0
    %v285 = vand.u32 %v209, 2147483648
    %v286 = vsel %vm284, %v285, %v283
    %v287 = vrsqrt.pop %v212
    %v288 = vmul.f32 %v212, %v287
    %vm289 = vcmp.eq.f32.partialorder %v212, inf
    %v290 = vsel %vm289, %v212, %v288
    %vm291 = vcmp.eq.f32.partialorder %v212, 0.0
    %v292 = vand.u32 %v212, 2147483648
    %v293 = vsel %vm291, %v292, %v290
    %v294 = vrsqrt.pop %v215
    %v295 = vmul.f32 %v215, %v294
    %vm296 = vcmp.eq.f32.partialorder %v215, inf
    %v297 = vsel %vm296, %v215, %v295
    %vm298 = vcmp.eq.f32.partialorder %v215, 0.0
    %v299 = vand.u32 %v215, 2147483648
    %v300 = vsel %vm298, %v299, %v297
    %v301 = vrsqrt.pop %v218
    %v302 = vmul.f32 %v218, %v301
    %vm303 = vcmp.eq.f32.partialorder %v218, inf
    %v304 = vsel %vm303, %v218, %v302
    %vm305 = vcmp.eq.f32.partialorder %v218, 0.0
    %v306 = vand.u32 %v218, 2147483648
    %v307 = vsel %vm305, %v306, %v304
    %v308 = vrsqrt.pop %v221
    %v309 = vmul.f32 %v221, %v308
    %vm310 = vcmp.eq.f32.partialorder %v221, inf
    %v311 = vsel %vm310, %v221, %v309
    %vm312 = vcmp.eq.f32.partialorder %v221, 0.0
    %v313 = vand.u32 %v221, 2147483648
    %v314 = vsel %vm312, %v313, %v311
    %v315 = vrsqrt.pop %v224
    %v316 = vmul.f32 %v224, %v315
    %vm317 = vcmp.eq.f32.partialorder %v224, inf
    %v318 = vsel %vm317, %v224, %v316
    %vm319 = vcmp.eq.f32.partialorder %v224, 0.0
    %v320 = vand.u32 %v224, 2147483648
    %v321 = vsel %vm319, %v320, %v318
    %v322 = vrsqrt.pop %v227
    %v323 = vmul.f32 %v227, %v322
    %vm324 = vcmp.eq.f32.partialorder %v227, inf
    %v325 = vsel %vm324, %v227, %v323
    %vm326 = vcmp.eq.f32.partialorder %v227, 0.0
    %v327 = vand.u32 %v227, 2147483648
    %v328 = vsel %vm326, %v327, %v325
    %v329 = vrsqrt.pop %v230
    %v330 = vmul.f32 %v230, %v329
    %vm331 = vcmp.eq.f32.partialorder %v230, inf
    %v332 = vsel %vm331, %v230, %v330
    %vm333 = vcmp.eq.f32.partialorder %v230, 0.0
    %v334 = vand.u32 %v230, 2147483648
    %v335 = vsel %vm333, %v334, %v332
    %v336 = vrsqrt.pop %v233
    %v337 = vmul.f32 %v233, %v336
    %vm338 = vcmp.eq.f32.partialorder %v233, inf
    %v339 = vsel %vm338, %v233, %v337
    %vm340 = vcmp.eq.f32.partialorder %v233, 0.0
    %v341 = vand.u32 %v233, 2147483648
    %v342 = vsel %vm340, %v341, %v339
    %v343 = vrsqrt.pop %v236
    %v344 = vmul.f32 %v236, %v343
    %vm345 = vcmp.eq.f32.partialorder %v236, inf
    %v346 = vsel %vm345, %v236, %v344
    %vm347 = vcmp.eq.f32.partialorder %v236, 0.0
    %v348 = vand.u32 %v236, 2147483648
    %v349 = vsel %vm347, %v348, %v346
    %v350 = vsub.f32 2.0, %v244
    %v351 = vsub.f32 2.0, %v251
    %v352 = vsub.f32 2.0, %v258
    %v353 = vsub.f32 2.0, %v265
    %v354 = vsub.f32 2.0, %v272
    %v355 = vsub.f32 2.0, %v279
    %v356 = vsub.f32 2.0, %v286
    %v357 = vsub.f32 2.0, %v293
    %v358 = vsub.f32 2.0, %v300
    %v359 = vsub.f32 2.0, %v307
    %v360 = vsub.f32 2.0, %v314
    %v361 = vsub.f32 2.0, %v321
    %v362 = vsub.f32 2.0, %v328
    %v363 = vsub.f32 2.0, %v335
    %v364 = vsub.f32 2.0, %v342
    %v365 = vsub.f32 2.0, %v349
    %v366 = vmax.f32 %v350, 0.0
    %v367 = vmax.f32 %v351, 0.0
    %v368 = vmax.f32 %v352, 0.0
    %v369 = vmax.f32 %v353, 0.0
    %v370 = vmax.f32 %v354, 0.0
    %v371 = vmax.f32 %v355, 0.0
    %v372 = vmax.f32 %v356, 0.0
    %v373 = vmax.f32 %v357, 0.0
    %v374 = vmax.f32 %v358, 0.0
    %v375 = vmax.f32 %v359, 0.0
    %v376 = vmax.f32 %v360, 0.0
    %v377 = vmax.f32 %v361, 0.0
    %v378 = vmax.f32 %v362, 0.0
    %v379 = vmax.f32 %v363, 0.0
    %v380 = vmax.f32 %v364, 0.0
    %v381 = vmax.f32 %v365, 0.0
    %v382 = vsub.f32 1.0, %v237
    %v399 = vlaneseq
    %v400 = vshrl.u32 %v399, 7
    %v401 = vsub.s32 0, %v400
    %v402 = vrot.slane %v191, %v401
    %v403 = vlaneseq
    %v404 = vshrl.u32 %v403, 7
    %v405 = vsub.s32 1, %v404
    %v406 = vrot.slane %v191, %v405
    %v407 = vlaneseq
    %v408 = vshrl.u32 %v407, 7
    %v409 = vsub.s32 2, %v408
    %v410 = vrot.slane %v191, %v409
    %v411 = vlaneseq
    %v412 = vshrl.u32 %v411, 7
    %v413 = vsub.s32 3, %v412
    %v414 = vrot.slane %v191, %v413
    %v415 = vlaneseq
    %v416 = vshrl.u32 %v415, 7
    %v417 = vsub.s32 4, %v416
    %v418 = vrot.slane %v191, %v417
    %v419 = vlaneseq
    %v420 = vshrl.u32 %v419, 7
    %v421 = vsub.s32 5, %v420
    %v422 = vrot.slane %v191, %v421
    %v423 = vlaneseq
    %v424 = vshrl.u32 %v423, 7
    %v425 = vsub.s32 6, %v424
    %v426 = vrot.slane %v191, %v425
    %v427 = vlaneseq
    %v428 = vshrl.u32 %v427, 7
    %v429 = vsub.s32 7, %v428
    %v430 = vrot.slane %v191, %v429
    %v431 = vlaneseq
    %v432 = vshrl.u32 %v431, 7
    %v433 = vsub.s32 0, %v432
    %v434 = vrot.slane %v194, %v433
    %v435 = vlaneseq
    %v436 = vshrl.u32 %v435, 7
    %v437 = vsub.s32 1, %v436
    %v438 = vrot.slane %v194, %v437
    %v439 = vlaneseq
    %v440 = vshrl.u32 %v439, 7
    %v441 = vsub.s32 2, %v440
    %v442 = vrot.slane %v194, %v441
    %v443 = vlaneseq
    %v444 = vshrl.u32 %v443, 7
    %v445 = vsub.s32 3, %v444
    %v446 = vrot.slane %v194, %v445
    %v447 = vlaneseq
    %v448 = vshrl.u32 %v447, 7
    %v449 = vsub.s32 4, %v448
    %v450 = vrot.slane %v194, %v449
    %v451 = vlaneseq
    %v452 = vshrl.u32 %v451, 7
    %v453 = vsub.s32 5, %v452
    %v454 = vrot.slane %v194, %v453
    %v455 = vlaneseq
    %v456 = vshrl.u32 %v455, 7
    %v457 = vsub.s32 6, %v456
    %v458 = vrot.slane %v194, %v457
    %v459 = vlaneseq
    %v460 = vshrl.u32 %v459, 7
    %v461 = vsub.s32 7, %v460
    %v462 = vrot.slane %v194, %v461
    %v463 = vlaneseq
    %v464 = vshrl.u32 %v463, 7
    %v465 = vsub.s32 0, %v464
    %v466 = vrot.slane %v197, %v465
    %v467 = vlaneseq
    %v468 = vshrl.u32 %v467, 7
    %v469 = vsub.s32 1, %v468
    %v470 = vrot.slane %v197, %v469
    %v471 = vlaneseq
    %v472 = vshrl.u32 %v471, 7
    %v473 = vsub.s32 2, %v472
    %v474 = vrot.slane %v197, %v473
    %v475 = vlaneseq
    %v476 = vshrl.u32 %v475, 7
    %v477 = vsub.s32 3, %v476
    %v478 = vrot.slane %v197, %v477
    %v479 = vlaneseq
    %v480 = vshrl.u32 %v479, 7
    %v481 = vsub.s32 4, %v480
    %v482 = vrot.slane %v197, %v481
    %v483 = vlaneseq
    %v484 = vshrl.u32 %v483, 7
    %v485 = vsub.s32 5, %v484
    %v486 = vrot.slane %v197, %v485
    %v487 = vlaneseq
    %v488 = vshrl.u32 %v487, 7
    %v489 = vsub.s32 6, %v488
    %v490 = vrot.slane %v197, %v489
    %v491 = vlaneseq
    %v492 = vshrl.u32 %v491, 7
    %v493 = vsub.s32 7, %v492
    %v494 = vrot.slane %v197, %v493
    %v495 = vlaneseq
    %v496 = vshrl.u32 %v495, 7
    %v497 = vsub.s32 0, %v496
    %v498 = vrot.slane %v200, %v497
    %v499 = vlaneseq
    %v500 = vshrl.u32 %v499, 7
    %v501 = vsub.s32 1, %v500
    %v502 = vrot.slane %v200, %v501
    %v503 = vlaneseq
    %v504 = vshrl.u32 %v503, 7
    %v505 = vsub.s32 2, %v504
    %v506 = vrot.slane %v200, %v505
    %v507 = vlaneseq
    %v508 = vshrl.u32 %v507, 7
    %v509 = vsub.s32 3, %v508
    %v510 = vrot.slane %v200, %v509
    %v511 = vlaneseq
    %v512 = vshrl.u32 %v511, 7
    %v513 = vsub.s32 4, %v512
    %v514 = vrot.slane %v200, %v513
    %v515 = vlaneseq
    %v516 = vshrl.u32 %v515, 7
    %v517 = vsub.s32 5, %v516
    %v518 = vrot.slane %v200, %v517
    %v519 = vlaneseq
    %v520 = vshrl.u32 %v519, 7
    %v521 = vsub.s32 6, %v520
    %v522 = vrot.slane %v200, %v521
    %v523 = vlaneseq
    %v524 = vshrl.u32 %v523, 7
    %v525 = vsub.s32 7, %v524
    %v526 = vrot.slane %v200, %v525
    %v527 = vlaneseq
    %v528 = vshrl.u32 %v527, 7
    %v529 = vsub.s32 0, %v528
    %v530 = vrot.slane %v203, %v529
    %v531 = vlaneseq
    %v532 = vshrl.u32 %v531, 7
    %v533 = vsub.s32 1, %v532
    %v534 = vrot.slane %v203, %v533
    %v535 = vlaneseq
    %v536 = vshrl.u32 %v535, 7
    %v537 = vsub.s32 2, %v536
    %v538 = vrot.slane %v203, %v537
    %v539 = vlaneseq
    %v540 = vshrl.u32 %v539, 7
    %v541 = vsub.s32 3, %v540
    %v542 = vrot.slane %v203, %v541
    %v543 = vlaneseq
    %v544 = vshrl.u32 %v543, 7
    %v545 = vsub.s32 4, %v544
    %v546 = vrot.slane %v203, %v545
    %v547 = vlaneseq
    %v548 = vshrl.u32 %v547, 7
    %v549 = vsub.s32 5, %v548
    %v550 = vrot.slane %v203, %v549
    %v551 = vlaneseq
    %v552 = vshrl.u32 %v551, 7
    %v553 = vsub.s32 6, %v552
    %v554 = vrot.slane %v203, %v553
    %v555 = vlaneseq
    %v556 = vshrl.u32 %v555, 7
    %v557 = vsub.s32 7, %v556
    %v558 = vrot.slane %v203, %v557
    %v559 = vlaneseq
    %v560 = vshrl.u32 %v559, 7
    %v561 = vsub.s32 0, %v560
    %v562 = vrot.slane %v206, %v561
    %v563 = vlaneseq
    %v564 = vshrl.u32 %v563, 7
    %v565 = vsub.s32 1, %v564
    %v566 = vrot.slane %v206, %v565
    %v567 = vlaneseq
    %v568 = vshrl.u32 %v567, 7
    %v569 = vsub.s32 2, %v568
    %v570 = vrot.slane %v206, %v569
    %v571 = vlaneseq
    %v572 = vshrl.u32 %v571, 7
    %v573 = vsub.s32 3, %v572
    %v574 = vrot.slane %v206, %v573
    %v575 = vlaneseq
    %v576 = vshrl.u32 %v575, 7
    %v577 = vsub.s32 4, %v576
    %v578 = vrot.slane %v206, %v577
    %v579 = vlaneseq
    %v580 = vshrl.u32 %v579, 7
    %v581 = vsub.s32 5, %v580
    %v582 = vrot.slane %v206, %v581
    %v583 = vlaneseq
    %v584 = vshrl.u32 %v583, 7
    %v585 = vsub.s32 6, %v584
    %v586 = vrot.slane %v206, %v585
    %v587 = vlaneseq
    %v588 = vshrl.u32 %v587, 7
    %v589 = vsub.s32 7, %v588
    %v590 = vrot.slane %v206, %v589
    %v591 = vlaneseq
    %v592 = vshrl.u32 %v591, 7
    %v593 = vsub.s32 0, %v592
    %v594 = vrot.slane %v209, %v593
    %v595 = vlaneseq
    %v596 = vshrl.u32 %v595, 7
    %v597 = vsub.s32 1, %v596
    %v598 = vrot.slane %v209, %v597
    %v599 = vlaneseq
    %v600 = vshrl.u32 %v599, 7
    %v601 = vsub.s32 2, %v600
    %v602 = vrot.slane %v209, %v601
    %v603 = vlaneseq
    %v604 = vshrl.u32 %v603, 7
    %v605 = vsub.s32 3, %v604
    %v606 = vrot.slane %v209, %v605
    %v607 = vlaneseq
    %v608 = vshrl.u32 %v607, 7
    %v609 = vsub.s32 4, %v608
    %v610 = vrot.slane %v209, %v609
    %v611 = vlaneseq
    %v612 = vshrl.u32 %v611, 7
    %v613 = vsub.s32 5, %v612
    %v614 = vrot.slane %v209, %v613
    %v615 = vlaneseq
    %v616 = vshrl.u32 %v615, 7
    %v617 = vsub.s32 6, %v616
    %v618 = vrot.slane %v209, %v617
    %v619 = vlaneseq
    %v620 = vshrl.u32 %v619, 7
    %v621 = vsub.s32 7, %v620
    %v622 = vrot.slane %v209, %v621
    %v623 = vlaneseq
    %v624 = vshrl.u32 %v623, 7
    %v625 = vsub.s32 0, %v624
    %v626 = vrot.slane %v212, %v625
    %v627 = vlaneseq
    %v628 = vshrl.u32 %v627, 7
    %v629 = vsub.s32 1, %v628
    %v630 = vrot.slane %v212, %v629
    %v631 = vlaneseq
    %v632 = vshrl.u32 %v631, 7
    %v633 = vsub.s32 2, %v632
    %v634 = vrot.slane %v212, %v633
    %v635 = vlaneseq
    %v636 = vshrl.u32 %v635, 7
    %v637 = vsub.s32 3, %v636
    %v638 = vrot.slane %v212, %v637
    %v639 = vlaneseq
    %v640 = vshrl.u32 %v639, 7
    %v641 = vsub.s32 4, %v640
    %v642 = vrot.slane %v212, %v641
    %v643 = vlaneseq
    %v644 = vshrl.u32 %v643, 7
    %v645 = vsub.s32 5, %v644
    %v646 = vrot.slane %v212, %v645
    %v647 = vlaneseq
    %v648 = vshrl.u32 %v647, 7
    %v649 = vsub.s32 6, %v648
    %v650 = vrot.slane %v212, %v649
    %v651 = vlaneseq
    %v652 = vshrl.u32 %v651, 7
    %v653 = vsub.s32 7, %v652
    %v654 = vrot.slane %v212, %v653
    %v655 = vlaneseq
    %v656 = vshrl.u32 %v655, 7
    %v657 = vsub.s32 0, %v656
    %v658 = vrot.slane %v215, %v657
    %v659 = vlaneseq
    %v660 = vshrl.u32 %v659, 7
    %v661 = vsub.s32 1, %v660
    %v662 = vrot.slane %v215, %v661
    %v663 = vlaneseq
    %v664 = vshrl.u32 %v663, 7
    %v665 = vsub.s32 2, %v664
    %v666 = vrot.slane %v215, %v665
    %v667 = vlaneseq
    %v668 = vshrl.u32 %v667, 7
    %v669 = vsub.s32 3, %v668
    %v670 = vrot.slane %v215, %v669
    %v671 = vlaneseq
    %v672 = vshrl.u32 %v671, 7
    %v673 = vsub.s32 4, %v672
    %v674 = vrot.slane %v215, %v673
    %v675 = vlaneseq
    %v676 = vshrl.u32 %v675, 7
    %v677 = vsub.s32 5, %v676
    %v678 = vrot.slane %v215, %v677
    %v679 = vlaneseq
    %v680 = vshrl.u32 %v679, 7
    %v681 = vsub.s32 6, %v680
    %v682 = vrot.slane %v215, %v681
    %v683 = vlaneseq
    %v684 = vshrl.u32 %v683, 7
    %v685 = vsub.s32 7, %v684
    %v686 = vrot.slane %v215, %v685
    %v687 = vlaneseq
    %v688 = vshrl.u32 %v687, 7
    %v689 = vsub.s32 0, %v688
    %v690 = vrot.slane %v218, %v689
    %v691 = vlaneseq
    %v692 = vshrl.u32 %v691, 7
    %v693 = vsub.s32 1, %v692
    %v694 = vrot.slane %v218, %v693
    %v695 = vlaneseq
    %v696 = vshrl.u32 %v695, 7
    %v697 = vsub.s32 2, %v696
    %v698 = vrot.slane %v218, %v697
    %v699 = vlaneseq
    %v700 = vshrl.u32 %v699, 7
    %v701 = vsub.s32 3, %v700
    %v702 = vrot.slane %v218, %v701
    %v703 = vlaneseq
    %v704 = vshrl.u32 %v703, 7
    %v705 = vsub.s32 4, %v704
    %v706 = vrot.slane %v218, %v705
    %v707 = vlaneseq
    %v708 = vshrl.u32 %v707, 7
    %v709 = vsub.s32 5, %v708
    %v710 = vrot.slane %v218, %v709
    %v711 = vlaneseq
    %v712 = vshrl.u32 %v711, 7
    %v713 = vsub.s32 6, %v712
    %v714 = vrot.slane %v218, %v713
    %v715 = vlaneseq
    %v716 = vshrl.u32 %v715, 7
    %v717 = vsub.s32 7, %v716
    %v718 = vrot.slane %v218, %v717
    %v719 = vlaneseq
    %v720 = vshrl.u32 %v719, 7
    %v721 = vsub.s32 0, %v720
    %v722 = vrot.slane %v221, %v721
    %v723 = vlaneseq
    %v724 = vshrl.u32 %v723, 7
    %v725 = vsub.s32 1, %v724
    %v726 = vrot.slane %v221, %v725
    %v727 = vlaneseq
    %v728 = vshrl.u32 %v727, 7
    %v729 = vsub.s32 2, %v728
    %v730 = vrot.slane %v221, %v729
    %v731 = vlaneseq
    %v732 = vshrl.u32 %v731, 7
    %v733 = vsub.s32 3, %v732
    %v734 = vrot.slane %v221, %v733
    %v735 = vlaneseq
    %v736 = vshrl.u32 %v735, 7
    %v737 = vsub.s32 4, %v736
    %v738 = vrot.slane %v221, %v737
    %v739 = vlaneseq
    %v740 = vshrl.u32 %v739, 7
    %v741 = vsub.s32 5, %v740
    %v742 = vrot.slane %v221, %v741
    %v743 = vlaneseq
    %v744 = vshrl.u32 %v743, 7
    %v745 = vsub.s32 6, %v744
    %v746 = vrot.slane %v221, %v745
    %v747 = vlaneseq
    %v748 = vshrl.u32 %v747, 7
    %v749 = vsub.s32 7, %v748
    %v750 = vrot.slane %v221, %v749
    %v751 = vlaneseq
    %v752 = vshrl.u32 %v751, 7
    %v753 = vsub.s32 0, %v752
    %v754 = vrot.slane %v224, %v753
    %v755 = vlaneseq
    %v756 = vshrl.u32 %v755, 7
    %v757 = vsub.s32 1, %v756
    %v758 = vrot.slane %v224, %v757
    %v759 = vlaneseq
    %v760 = vshrl.u32 %v759, 7
    %v761 = vsub.s32 2, %v760
    %v762 = vrot.slane %v224, %v761
    %v763 = vlaneseq
    %v764 = vshrl.u32 %v763, 7
    %v765 = vsub.s32 3, %v764
    %v766 = vrot.slane %v224, %v765
    %v767 = vlaneseq
    %v768 = vshrl.u32 %v767, 7
    %v769 = vsub.s32 4, %v768
    %v770 = vrot.slane %v224, %v769
    %v771 = vlaneseq
    %v772 = vshrl.u32 %v771, 7
    %v773 = vsub.s32 5, %v772
    %v774 = vrot.slane %v224, %v773
    %v775 = vlaneseq
    %v776 = vshrl.u32 %v775, 7
    %v777 = vsub.s32 6, %v776
    %v778 = vrot.slane %v224, %v777
    %v779 = vlaneseq
    %v780 = vshrl.u32 %v779, 7
    %v781 = vsub.s32 7, %v780
    %v782 = vrot.slane %v224, %v781
    %v783 = vlaneseq
    %v784 = vshrl.u32 %v783, 7
    %v785 = vsub.s32 0, %v784
    %v786 = vrot.slane %v227, %v785
    %v787 = vlaneseq
    %v788 = vshrl.u32 %v787, 7
    %v789 = vsub.s32 1, %v788
    %v790 = vrot.slane %v227, %v789
    %v791 = vlaneseq
    %v792 = vshrl.u32 %v791, 7
    %v793 = vsub.s32 2, %v792
    %v794 = vrot.slane %v227, %v793
    %v795 = vlaneseq
    %v796 = vshrl.u32 %v795, 7
    %v797 = vsub.s32 3, %v796
    %v798 = vrot.slane %v227, %v797
    %v799 = vlaneseq
    %v800 = vshrl.u32 %v799, 7
    %v801 = vsub.s32 4, %v800
    %v802 = vrot.slane %v227, %v801
    %v803 = vlaneseq
    %v804 = vshrl.u32 %v803, 7
    %v805 = vsub.s32 5, %v804
    %v806 = vrot.slane %v227, %v805
    %v807 = vlaneseq
    %v808 = vshrl.u32 %v807, 7
    %v809 = vsub.s32 6, %v808
    %v810 = vrot.slane %v227, %v809
    %v811 = vlaneseq
    %v812 = vshrl.u32 %v811, 7
    %v813 = vsub.s32 7, %v812
    %v814 = vrot.slane %v227, %v813
    %v815 = vlaneseq
    %v816 = vshrl.u32 %v815, 7
    %v817 = vsub.s32 0, %v816
    %v818 = vrot.slane %v230, %v817
    %v819 = vlaneseq
    %v820 = vshrl.u32 %v819, 7
    %v821 = vsub.s32 1, %v820
    %v822 = vrot.slane %v230, %v821
    %v823 = vlaneseq
    %v824 = vshrl.u32 %v823, 7
    %v825 = vsub.s32 2, %v824
    %v826 = vrot.slane %v230, %v825
    %v827 = vlaneseq
    %v828 = vshrl.u32 %v827, 7
    %v829 = vsub.s32 3, %v828
    %v830 = vrot.slane %v230, %v829
    %v831 = vlaneseq
    %v832 = vshrl.u32 %v831, 7
    %v833 = vsub.s32 4, %v832
    %v834 = vrot.slane %v230, %v833
    %v835 = vlaneseq
    %v836 = vshrl.u32 %v835, 7
    %v837 = vsub.s32 5, %v836
    %v838 = vrot.slane %v230, %v837
    %v839 = vlaneseq
    %v840 = vshrl.u32 %v839, 7
    %v841 = vsub.s32 6, %v840
    %v842 = vrot.slane %v230, %v841
    %v843 = vlaneseq
    %v844 = vshrl.u32 %v843, 7
    %v845 = vsub.s32 7, %v844
    %v846 = vrot.slane %v230, %v845
    %v847 = vlaneseq
    %v848 = vshrl.u32 %v847, 7
    %v849 = vsub.s32 0, %v848
    %v850 = vrot.slane %v233, %v849
    %v851 = vlaneseq
    %v852 = vshrl.u32 %v851, 7
    %v853 = vsub.s32 1, %v852
    %v854 = vrot.slane %v233, %v853
    %v855 = vlaneseq
    %v856 = vshrl.u32 %v855, 7
    %v857 = vsub.s32 2, %v856
    %v858 = vrot.slane %v233, %v857
    %v859 = vlaneseq
    %v860 = vshrl.u32 %v859, 7
    %v861 = vsub.s32 3, %v860
    %v862 = vrot.slane %v233, %v861
    %v863 = vlaneseq
    %v864 = vshrl.u32 %v863, 7
    %v865 = vsub.s32 4, %v864
    %v866 = vrot.slane %v233, %v865
    %v867 = vlaneseq
    %v868 = vshrl.u32 %v867, 7
    %v869 = vsub.s32 5, %v868
    %v870 = vrot.slane %v233, %v869
    %v871 = vlaneseq
    %v872 = vshrl.u32 %v871, 7
    %v873 = vsub.s32 6, %v872
    %v874 = vrot.slane %v233, %v873
    %v875 = vlaneseq
    %v876 = vshrl.u32 %v875, 7
    %v877 = vsub.s32 7, %v876
    %v878 = vrot.slane %v233, %v877
    %v879 = vlaneseq
    %v880 = vshrl.u32 %v879, 7
    %v881 = vsub.s32 0, %v880
    %v882 = vrot.slane %v236, %v881
    %v883 = vlaneseq
    %v884 = vshrl.u32 %v883, 7
    %v885 = vsub.s32 1, %v884
    %v886 = vrot.slane %v236, %v885
    %v887 = vlaneseq
    %v888 = vshrl.u32 %v887, 7
    %v889 = vsub.s32 2, %v888
    %v890 = vrot.slane %v236, %v889
    %v891 = vlaneseq
    %v892 = vshrl.u32 %v891, 7
    %v893 = vsub.s32 3, %v892
    %v894 = vrot.slane %v236, %v893
    %v895 = vlaneseq
    %v896 = vshrl.u32 %v895, 7
    %v897 = vsub.s32 4, %v896
    %v898 = vrot.slane %v236, %v897
    %v899 = vlaneseq
    %v900 = vshrl.u32 %v899, 7
    %v901 = vsub.s32 5, %v900
    %v902 = vrot.slane %v236, %v901
    %v903 = vlaneseq
    %v904 = vshrl.u32 %v903, 7
    %v905 = vsub.s32 6, %v904
    %v906 = vrot.slane %v236, %v905
    %v907 = vlaneseq
    %v908 = vshrl.u32 %v907, 7
    %v909 = vsub.s32 7, %v908
    %v910 = vrot.slane %v236, %v909
    %v911 = vcombine.low %v402, %v406
    %v912 = vcombine.low %v410, %v414
    %v913 = vcombine.low %v418, %v422
    %v914 = vcombine.low %v426, %v430
    %v916 = vunpack.c.l.s4 1966171168
    %v917 = vunpack.c.0.s8 %v916
    %v918 = vlaneseq
    %v919 = vshrl.u32 %v918, 7
    %v920 = vsub.s32 %v917, %v919
    %v921 = vrot.slane %v911, %v920
    %v923 = vunpack.c.l.s4 1966171168
    %v924 = vunpack.c.0.s8 %v923
    %v925 = vlaneseq
    %v926 = vshrl.u32 %v925, 7
    %v927 = vsub.s32 %v924, %v926
    %v928 = vrot.slane %v912, %v927
    %v930 = vunpack.c.l.s4 1966171168
    %v931 = vunpack.c.0.s8 %v930
    %v932 = vlaneseq
    %v933 = vshrl.u32 %v932, 7
    %v934 = vsub.s32 %v931, %v933
    %v935 = vrot.slane %v913, %v934
    %v937 = vunpack.c.l.s4 1966171168
    %v938 = vunpack.c.0.s8 %v937
    %v939 = vlaneseq
    %v940 = vshrl.u32 %v939, 7
    %v941 = vsub.s32 %v938, %v940
    %v942 = vrot.slane %v914, %v941
    %v943 = vcombine.low %v921, %v928
    %v944 = vcombine.low %v935, %v942
    %v946 = vunpack.c.l.s4 1966171168
    %v947 = vunpack.c.0.s8 %v946
    %v948 = vlaneseq
    %v949 = vshrl.u32 %v948, 7
    %v950 = vsub.s32 %v947, %v949
    %v951 = vrot.slane %v943, %v950
    %v953 = vunpack.c.l.s4 1966171168
    %v954 = vunpack.c.0.s8 %v953
    %v955 = vlaneseq
    %v956 = vshrl.u32 %v955, 7
    %v957 = vsub.s32 %v954, %v956
    %v958 = vrot.slane %v944, %v957
    %v959 = vcombine.low %v951, %v958
    %v960 = vcombine.low %v434, %v438
    %v961 = vcombine.low %v442, %v446
    %v962 = vcombine.low %v450, %v454
    %v963 = vcombine.low %v458, %v462
    %v965 = vunpack.c.l.s4 1966171168
    %v966 = vunpack.c.0.s8 %v965
    %v967 = vlaneseq
    %v968 = vshrl.u32 %v967, 7
    %v969 = vsub.s32 %v966, %v968
    %v970 = vrot.slane %v960, %v969
    %v972 = vunpack.c.l.s4 1966171168
    %v973 = vunpack.c.0.s8 %v972
    %v974 = vlaneseq
    %v975 = vshrl.u32 %v974, 7
    %v976 = vsub.s32 %v973, %v975
    %v977 = vrot.slane %v961, %v976
    %v979 = vunpack.c.l.s4 1966171168
    %v980 = vunpack.c.0.s8 %v979
    %v981 = vlaneseq
    %v982 = vshrl.u32 %v981, 7
    %v983 = vsub.s32 %v980, %v982
    %v984 = vrot.slane %v962, %v983
    %v986 = vunpack.c.l.s4 1966171168
    %v987 = vunpack.c.0.s8 %v986
    %v988 = vlaneseq
    %v989 = vshrl.u32 %v988, 7
    %v990 = vsub.s32 %v987, %v989
    %v991 = vrot.slane %v963, %v990
    %v992 = vcombine.low %v970, %v977
    %v993 = vcombine.low %v984, %v991
    %v995 = vunpack.c.l.s4 1966171168
    %v996 = vunpack.c.0.s8 %v995
    %v997 = vlaneseq
    %v998 = vshrl.u32 %v997, 7
    %v999 = vsub.s32 %v996, %v998
    %v1000 = vrot.slane %v992, %v999
    %v1002 = vunpack.c.l.s4 1966171168
    %v1003 = vunpack.c.0.s8 %v1002
    %v1004 = vlaneseq
    %v1005 = vshrl.u32 %v1004, 7
    %v1006 = vsub.s32 %v1003, %v1005
    %v1007 = vrot.slane %v993, %v1006
    %v1008 = vcombine.low %v1000, %v1007
    %v1009 = vcombine.low %v466, %v470
    %v1010 = vcombine.low %v474, %v478
    %v1011 = vcombine.low %v482, %v486
    %v1012 = vcombine.low %v490, %v494
    %v1014 = vunpack.c.l.s4 1966171168
    %v1015 = vunpack.c.0.s8 %v1014
    %v1016 = vlaneseq
    %v1017 = vshrl.u32 %v1016, 7
    %v1018 = vsub.s32 %v1015, %v1017
    %v1019 = vrot.slane %v1009, %v1018
    %v1021 = vunpack.c.l.s4 1966171168
    %v1022 = vunpack.c.0.s8 %v1021
    %v1023 = vlaneseq
    %v1024 = vshrl.u32 %v1023, 7
    %v1025 = vsub.s32 %v1022, %v1024
    %v1026 = vrot.slane %v1010, %v1025
    %v1028 = vunpack.c.l.s4 1966171168
    %v1029 = vunpack.c.0.s8 %v1028
    %v1030 = vlaneseq
    %v1031 = vshrl.u32 %v1030, 7
    %v1032 = vsub.s32 %v1029, %v1031
    %v1033 = vrot.slane %v1011, %v1032
    %v1035 = vunpack.c.l.s4 1966171168
    %v1036 = vunpack.c.0.s8 %v1035
    %v1037 = vlaneseq
    %v1038 = vshrl.u32 %v1037, 7
    %v1039 = vsub.s32 %v1036, %v1038
    %v1040 = vrot.slane %v1012, %v1039
    %v1041 = vcombine.low %v1019, %v1026
    %v1042 = vcombine.low %v1033, %v1040
    %v1044 = vunpack.c.l.s4 1966171168
    %v1045 = vunpack.c.0.s8 %v1044
    %v1046 = vlaneseq
    %v1047 = vshrl.u32 %v1046, 7
    %v1048 = vsub.s32 %v1045, %v1047
    %v1049 = vrot.slane %v1041, %v1048
    %v1051 = vunpack.c.l.s4 1966171168
    %v1052 = vunpack.c.0.s8 %v1051
    %v1053 = vlaneseq
    %v1054 = vshrl.u32 %v1053, 7
    %v1055 = vsub.s32 %v1052, %v1054
    %v1056 = vrot.slane %v1042, %v1055
    %v1057 = vcombine.low %v1049, %v1056
    %v1058 = vcombine.low %v498, %v502
    %v1059 = vcombine.low %v506, %v510
    %v1060 = vcombine.low %v514, %v518
    %v1061 = vcombine.low %v522, %v526
    %v1063 = vunpack.c.l.s4 1966171168
    %v1064 = vunpack.c.0.s8 %v1063
    %v1065 = vlaneseq
    %v1066 = vshrl.u32 %v1065, 7
    %v1067 = vsub.s32 %v1064, %v1066
    %v1068 = vrot.slane %v1058, %v1067
    %v1070 = vunpack.c.l.s4 1966171168
    %v1071 = vunpack.c.0.s8 %v1070
    %v1072 = vlaneseq
    %v1073 = vshrl.u32 %v1072, 7
    %v1074 = vsub.s32 %v1071, %v1073
    %v1075 = vrot.slane %v1059, %v1074
    %v1077 = vunpack.c.l.s4 1966171168
    %v1078 = vunpack.c.0.s8 %v1077
    %v1079 = vlaneseq
    %v1080 = vshrl.u32 %v1079, 7
    %v1081 = vsub.s32 %v1078, %v1080
    %v1082 = vrot.slane %v1060, %v1081
    %v1084 = vunpack.c.l.s4 1966171168
    %v1085 = vunpack.c.0.s8 %v1084
    %v1086 = vlaneseq
    %v1087 = vshrl.u32 %v1086, 7
    %v1088 = vsub.s32 %v1085, %v1087
    %v1089 = vrot.slane %v1061, %v1088
    %v1090 = vcombine.low %v1068, %v1075
    %v1091 = vcombine.low %v1082, %v1089
    %v1093 = vunpack.c.l.s4 1966171168
    %v1094 = vunpack.c.0.s8 %v1093
    %v1095 = vlaneseq
    %v1096 = vshrl.u32 %v1095, 7
    %v1097 = vsub.s32 %v1094, %v1096
    %v1098 = vrot.slane %v1090, %v1097
    %v1100 = vunpack.c.l.s4 1966171168
    %v1101 = vunpack.c.0.s8 %v1100
    %v1102 = vlaneseq
    %v1103 = vshrl.u32 %v1102, 7
    %v1104 = vsub.s32 %v1101, %v1103
    %v1105 = vrot.slane %v1091, %v1104
    %v1106 = vcombine.low %v1098, %v1105
    %v1107 = vcombine.low %v530, %v534
    %v1108 = vcombine.low %v538, %v542
    %v1109 = vcombine.low %v546, %v550
    %v1110 = vcombine.low %v554, %v558
    %v1112 = vunpack.c.l.s4 1966171168
    %v1113 = vunpack.c.0.s8 %v1112
    %v1114 = vlaneseq
    %v1115 = vshrl.u32 %v1114, 7
    %v1116 = vsub.s32 %v1113, %v1115
    %v1117 = vrot.slane %v1107, %v1116
    %v1119 = vunpack.c.l.s4 1966171168
    %v1120 = vunpack.c.0.s8 %v1119
    %v1121 = vlaneseq
    %v1122 = vshrl.u32 %v1121, 7
    %v1123 = vsub.s32 %v1120, %v1122
    %v1124 = vrot.slane %v1108, %v1123
    %v1126 = vunpack.c.l.s4 1966171168
    %v1127 = vunpack.c.0.s8 %v1126
    %v1128 = vlaneseq
    %v1129 = vshrl.u32 %v1128, 7
    %v1130 = vsub.s32 %v1127, %v1129
    %v1131 = vrot.slane %v1109, %v1130
    %v1133 = vunpack.c.l.s4 1966171168
    %v1134 = vunpack.c.0.s8 %v1133
    %v1135 = vlaneseq
    %v1136 = vshrl.u32 %v1135, 7
    %v1137 = vsub.s32 %v1134, %v1136
    %v1138 = vrot.slane %v1110, %v1137
    %v1139 = vcombine.low %v1117, %v1124
    %v1140 = vcombine.low %v1131, %v1138
    %v1142 = vunpack.c.l.s4 1966171168
    %v1143 = vunpack.c.0.s8 %v1142
    %v1144 = vlaneseq
    %v1145 = vshrl.u32 %v1144, 7
    %v1146 = vsub.s32 %v1143, %v1145
    %v1147 = vrot.slane %v1139, %v1146
    %v1149 = vunpack.c.l.s4 1966171168
    %v1150 = vunpack.c.0.s8 %v1149
    %v1151 = vlaneseq
    %v1152 = vshrl.u32 %v1151, 7
    %v1153 = vsub.s32 %v1150, %v1152
    %v1154 = vrot.slane %v1140, %v1153
    %v1155 = vcombine.low %v1147, %v1154
    %v1156 = vcombine.low %v562, %v566
    %v1157 = vcombine.low %v570, %v574
    %v1158 = vcombine.low %v578, %v582
    %v1159 = vcombine.low %v586, %v590
    %v1161 = vunpack.c.l.s4 1966171168
    %v1162 = vunpack.c.0.s8 %v1161
    %v1163 = vlaneseq
    %v1164 = vshrl.u32 %v1163, 7
    %v1165 = vsub.s32 %v1162, %v1164
    %v1166 = vrot.slane %v1156, %v1165
    %v1168 = vunpack.c.l.s4 1966171168
    %v1169 = vunpack.c.0.s8 %v1168
    %v1170 = vlaneseq
    %v1171 = vshrl.u32 %v1170, 7
    %v1172 = vsub.s32 %v1169, %v1171
    %v1173 = vrot.slane %v1157, %v1172
    %v1175 = vunpack.c.l.s4 1966171168
    %v1176 = vunpack.c.0.s8 %v1175
    %v1177 = vlaneseq
    %v1178 = vshrl.u32 %v1177, 7
    %v1179 = vsub.s32 %v1176, %v1178
    %v1180 = vrot.slane %v1158, %v1179
    %v1182 = vunpack.c.l.s4 1966171168
    %v1183 = vunpack.c.0.s8 %v1182
    %v1184 = vlaneseq
    %v1185 = vshrl.u32 %v1184, 7
    %v1186 = vsub.s32 %v1183, %v1185
    %v1187 = vrot.slane %v1159, %v1186
    %v1188 = vcombine.low %v1166, %v1173
    %v1189 = vcombine.low %v1180, %v1187
    %v1191 = vunpack.c.l.s4 1966171168
    %v1192 = vunpack.c.0.s8 %v1191
    %v1193 = vlaneseq
    %v1194 = vshrl.u32 %v1193, 7
    %v1195 = vsub.s32 %v1192, %v1194
    %v1196 = vrot.slane %v1188, %v1195
    %v1198 = vunpack.c.l.s4 1966171168
    %v1199 = vunpack.c.0.s8 %v1198
    %v1200 = vlaneseq
    %v1201 = vshrl.u32 %v1200, 7
    %v1202 = vsub.s32 %v1199, %v1201
    %v1203 = vrot.slane %v1189, %v1202
    %v1204 = vcombine.low %v1196, %v1203
    %v1205 = vcombine.low %v594, %v598
    %v1206 = vcombine.low %v602, %v606
    %v1207 = vcombine.low %v610, %v614
    %v1208 = vcombine.low %v618, %v622
    %v1210 = vunpack.c.l.s4 1966171168
    %v1211 = vunpack.c.0.s8 %v1210
    %v1212 = vlaneseq
    %v1213 = vshrl.u32 %v1212, 7
    %v1214 = vsub.s32 %v1211, %v1213
    %v1215 = vrot.slane %v1205, %v1214
    %v1217 = vunpack.c.l.s4 1966171168
    %v1218 = vunpack.c.0.s8 %v1217
    %v1219 = vlaneseq
    %v1220 = vshrl.u32 %v1219, 7
    %v1221 = vsub.s32 %v1218, %v1220
    %v1222 = vrot.slane %v1206, %v1221
    %v1224 = vunpack.c.l.s4 1966171168
    %v1225 = vunpack.c.0.s8 %v1224
    %v1226 = vlaneseq
    %v1227 = vshrl.u32 %v1226, 7
    %v1228 = vsub.s32 %v1225, %v1227
    %v1229 = vrot.slane %v1207, %v1228
    %v1231 = vunpack.c.l.s4 1966171168
    %v1232 = vunpack.c.0.s8 %v1231
    %v1233 = vlaneseq
    %v1234 = vshrl.u32 %v1233, 7
    %v1235 = vsub.s32 %v1232, %v1234
    %v1236 = vrot.slane %v1208, %v1235
    %v1237 = vcombine.low %v1215, %v1222
    %v1238 = vcombine.low %v1229, %v1236
    %v1240 = vunpack.c.l.s4 1966171168
    %v1241 = vunpack.c.0.s8 %v1240
    %v1242 = vlaneseq
    %v1243 = vshrl.u32 %v1242, 7
    %v1244 = vsub.s32 %v1241, %v1243
    %v1245 = vrot.slane %v1237, %v1244
    %v1247 = vunpack.c.l.s4 1966171168
    %v1248 = vunpack.c.0.s8 %v1247
    %v1249 = vlaneseq
    %v1250 = vshrl.u32 %v1249, 7
    %v1251 = vsub.s32 %v1248, %v1250
    %v1252 = vrot.slane %v1238, %v1251
    %v1253 = vcombine.low %v1245, %v1252
    %v1254 = vcombine.low %v626, %v630
    %v1255 = vcombine.low %v634, %v638
    %v1256 = vcombine.low %v642, %v646
    %v1257 = vcombine.low %v650, %v654
    %v1259 = vunpack.c.l.s4 1966171168
    %v1260 = vunpack.c.0.s8 %v1259
    %v1261 = vlaneseq
    %v1262 = vshrl.u32 %v1261, 7
    %v1263 = vsub.s32 %v1260, %v1262
    %v1264 = vrot.slane %v1254, %v1263
    %v1266 = vunpack.c.l.s4 1966171168
    %v1267 = vunpack.c.0.s8 %v1266
    %v1268 = vlaneseq
    %v1269 = vshrl.u32 %v1268, 7
    %v1270 = vsub.s32 %v1267, %v1269
    %v1271 = vrot.slane %v1255, %v1270
    %v1273 = vunpack.c.l.s4 1966171168
    %v1274 = vunpack.c.0.s8 %v1273
    %v1275 = vlaneseq
    %v1276 = vshrl.u32 %v1275, 7
    %v1277 = vsub.s32 %v1274, %v1276
    %v1278 = vrot.slane %v1256, %v1277
    %v1280 = vunpack.c.l.s4 1966171168
    %v1281 = vunpack.c.0.s8 %v1280
    %v1282 = vlaneseq
    %v1283 = vshrl.u32 %v1282, 7
    %v1284 = vsub.s32 %v1281, %v1283
    %v1285 = vrot.slane %v1257, %v1284
    %v1286 = vcombine.low %v1264, %v1271
    %v1287 = vcombine.low %v1278, %v1285
    %v1289 = vunpack.c.l.s4 1966171168
    %v1290 = vunpack.c.0.s8 %v1289
    %v1291 = vlaneseq
    %v1292 = vshrl.u32 %v1291, 7
    %v1293 = vsub.s32 %v1290, %v1292
    %v1294 = vrot.slane %v1286, %v1293
    %v1296 = vunpack.c.l.s4 1966171168
    %v1297 = vunpack.c.0.s8 %v1296
    %v1298 = vlaneseq
    %v1299 = vshrl.u32 %v1298, 7
    %v1300 = vsub.s32 %v1297, %v1299
    %v1301 = vrot.slane %v1287, %v1300
    %v1302 = vcombine.low %v1294, %v1301
    %v1303 = vcombine.low %v658, %v662
    %v1304 = vcombine.low %v666, %v670
    %v1305 = vcombine.low %v674, %v678
    %v1306 = vcombine.low %v682, %v686
    %v1308 = vunpack.c.l.s4 1966171168
    %v1309 = vunpack.c.0.s8 %v1308
    %v1310 = vlaneseq
    %v1311 = vshrl.u32 %v1310, 7
    %v1312 = vsub.s32 %v1309, %v1311
    %v1313 = vrot.slane %v1303, %v1312
    %v1315 = vunpack.c.l.s4 1966171168
    %v1316 = vunpack.c.0.s8 %v1315
    %v1317 = vlaneseq
    %v1318 = vshrl.u32 %v1317, 7
    %v1319 = vsub.s32 %v1316, %v1318
    %v1320 = vrot.slane %v1304, %v1319
    %v1322 = vunpack.c.l.s4 1966171168
    %v1323 = vunpack.c.0.s8 %v1322
    %v1324 = vlaneseq
    %v1325 = vshrl.u32 %v1324, 7
    %v1326 = vsub.s32 %v1323, %v1325
    %v1327 = vrot.slane %v1305, %v1326
    %v1329 = vunpack.c.l.s4 1966171168
    %v1330 = vunpack.c.0.s8 %v1329
    %v1331 = vlaneseq
    %v1332 = vshrl.u32 %v1331, 7
    %v1333 = vsub.s32 %v1330, %v1332
    %v1334 = vrot.slane %v1306, %v1333
    %v1335 = vcombine.low %v1313, %v1320
    %v1336 = vcombine.low %v1327, %v1334
    %v1338 = vunpack.c.l.s4 1966171168
    %v1339 = vunpack.c.0.s8 %v1338
    %v1340 = vlaneseq
    %v1341 = vshrl.u32 %v1340, 7
    %v1342 = vsub.s32 %v1339, %v1341
    %v1343 = vrot.slane %v1335, %v1342
    %v1345 = vunpack.c.l.s4 1966171168
    %v1346 = vunpack.c.0.s8 %v1345
    %v1347 = vlaneseq
    %v1348 = vshrl.u32 %v1347, 7
    %v1349 = vsub.s32 %v1346, %v1348
    %v1350 = vrot.slane %v1336, %v1349
    %v1351 = vcombine.low %v1343, %v1350
    %v1352 = vcombine.low %v690, %v694
    %v1353 = vcombine.low %v698, %v702
    %v1354 = vcombine.low %v706, %v710
    %v1355 = vcombine.low %v714, %v718
    %v1357 = vunpack.c.l.s4 1966171168
    %v1358 = vunpack.c.0.s8 %v1357
    %v1359 = vlaneseq
    %v1360 = vshrl.u32 %v1359, 7
    %v1361 = vsub.s32 %v1358, %v1360
    %v1362 = vrot.slane %v1352, %v1361
    %v1364 = vunpack.c.l.s4 1966171168
    %v1365 = vunpack.c.0.s8 %v1364
    %v1366 = vlaneseq
    %v1367 = vshrl.u32 %v1366, 7
    %v1368 = vsub.s32 %v1365, %v1367
    %v1369 = vrot.slane %v1353, %v1368
    %v1371 = vunpack.c.l.s4 1966171168
    %v1372 = vunpack.c.0.s8 %v1371
    %v1373 = vlaneseq
    %v1374 = vshrl.u32 %v1373, 7
    %v1375 = vsub.s32 %v1372, %v1374
    %v1376 = vrot.slane %v1354, %v1375
    %v1378 = vunpack.c.l.s4 1966171168
    %v1379 = vunpack.c.0.s8 %v1378
    %v1380 = vlaneseq
    %v1381 = vshrl.u32 %v1380, 7
    %v1382 = vsub.s32 %v1379, %v1381
    %v1383 = vrot.slane %v1355, %v1382
    %v1384 = vcombine.low %v1362, %v1369
    %v1385 = vcombine.low %v1376, %v1383
    %v1387 = vunpack.c.l.s4 1966171168
    %v1388 = vunpack.c.0.s8 %v1387
    %v1389 = vlaneseq
    %v1390 = vshrl.u32 %v1389, 7
    %v1391 = vsub.s32 %v1388, %v1390
    %v1392 = vrot.slane %v1384, %v1391
    %v1394 = vunpack.c.l.s4 1966171168
    %v1395 = vunpack.c.0.s8 %v1394
    %v1396 = vlaneseq
    %v1397 = vshrl.u32 %v1396, 7
    %v1398 = vsub.s32 %v1395, %v1397
    %v1399 = vrot.slane %v1385, %v1398
    %v1400 = vcombine.low %v1392, %v1399
    %v1401 = vcombine.low %v722, %v726
    %v1402 = vcombine.low %v730, %v734
    %v1403 = vcombine.low %v738, %v742
    %v1404 = vcombine.low %v746, %v750
    %v1406 = vunpack.c.l.s4 1966171168
    %v1407 = vunpack.c.0.s8 %v1406
    %v1408 = vlaneseq
    %v1409 = vshrl.u32 %v1408, 7
    %v1410 = vsub.s32 %v1407, %v1409
    %v1411 = vrot.slane %v1401, %v1410
    %v1413 = vunpack.c.l.s4 1966171168
    %v1414 = vunpack.c.0.s8 %v1413
    %v1415 = vlaneseq
    %v1416 = vshrl.u32 %v1415, 7
    %v1417 = vsub.s32 %v1414, %v1416
    %v1418 = vrot.slane %v1402, %v1417
    %v1420 = vunpack.c.l.s4 1966171168
    %v1421 = vunpack.c.0.s8 %v1420
    %v1422 = vlaneseq
    %v1423 = vshrl.u32 %v1422, 7
    %v1424 = vsub.s32 %v1421, %v1423
    %v1425 = vrot.slane %v1403, %v1424
    %v1427 = vunpack.c.l.s4 1966171168
    %v1428 = vunpack.c.0.s8 %v1427
    %v1429 = vlaneseq
    %v1430 = vshrl.u32 %v1429, 7
    %v1431 = vsub.s32 %v1428, %v1430
    %v1432 = vrot.slane %v1404, %v1431
    %v1433 = vcombine.low %v1411, %v1418
    %v1434 = vcombine.low %v1425, %v1432
    %v1436 = vunpack.c.l.s4 1966171168
    %v1437 = vunpack.c.0.s8 %v1436
    %v1438 = vlaneseq
    %v1439 = vshrl.u32 %v1438, 7
    %v1440 = vsub.s32 %v1437, %v1439
    %v1441 = vrot.slane %v1433, %v1440
    %v1443 = vunpack.c.l.s4 1966171168
    %v1444 = vunpack.c.0.s8 %v1443
    %v1445 = vlaneseq
    %v1446 = vshrl.u32 %v1445, 7
    %v1447 = vsub.s32 %v1444, %v1446
    %v1448 = vrot.slane %v1434, %v1447
    %v1449 = vcombine.low %v1441, %v1448
    %v1450 = vcombine.low %v754, %v758
    %v1451 = vcombine.low %v762, %v766
    %v1452 = vcombine.low %v770, %v774
    %v1453 = vcombine.low %v778, %v782
    %v1455 = vunpack.c.l.s4 1966171168
    %v1456 = vunpack.c.0.s8 %v1455
    %v1457 = vlaneseq
    %v1458 = vshrl.u32 %v1457, 7
    %v1459 = vsub.s32 %v1456, %v1458
    %v1460 = vrot.slane %v1450, %v1459
    %v1462 = vunpack.c.l.s4 1966171168
    %v1463 = vunpack.c.0.s8 %v1462
    %v1464 = vlaneseq
    %v1465 = vshrl.u32 %v1464, 7
    %v1466 = vsub.s32 %v1463, %v1465
    %v1467 = vrot.slane %v1451, %v1466
    %v1469 = vunpack.c.l.s4 1966171168
    %v1470 = vunpack.c.0.s8 %v1469
    %v1471 = vlaneseq
    %v1472 = vshrl.u32 %v1471, 7
    %v1473 = vsub.s32 %v1470, %v1472
    %v1474 = vrot.slane %v1452, %v1473
    %v1476 = vunpack.c.l.s4 1966171168
    %v1477 = vunpack.c.0.s8 %v1476
    %v1478 = vlaneseq
    %v1479 = vshrl.u32 %v1478, 7
    %v1480 = vsub.s32 %v1477, %v1479
    %v1481 = vrot.slane %v1453, %v1480
    %v1482 = vcombine.low %v1460, %v1467
    %v1483 = vcombine.low %v1474, %v1481
    %v1485 = vunpack.c.l.s4 1966171168
    %v1486 = vunpack.c.0.s8 %v1485
    %v1487 = vlaneseq
    %v1488 = vshrl.u32 %v1487, 7
    %v1489 = vsub.s32 %v1486, %v1488
    %v1490 = vrot.slane %v1482, %v1489
    %v1492 = vunpack.c.l.s4 1966171168
    %v1493 = vunpack.c.0.s8 %v1492
    %v1494 = vlaneseq
    %v1495 = vshrl.u32 %v1494, 7
    %v1496 = vsub.s32 %v1493, %v1495
    %v1497 = vrot.slane %v1483, %v1496
    %v1498 = vcombine.low %v1490, %v1497
    %v1499 = vcombine.low %v786, %v790
    %v1500 = vcombine.low %v794, %v798
    %v1501 = vcombine.low %v802, %v806
    %v1502 = vcombine.low %v810, %v814
    %v1504 = vunpack.c.l.s4 1966171168
    %v1505 = vunpack.c.0.s8 %v1504
    %v1506 = vlaneseq
    %v1507 = vshrl.u32 %v1506, 7
    %v1508 = vsub.s32 %v1505, %v1507
    %v1509 = vrot.slane %v1499, %v1508
    %v1511 = vunpack.c.l.s4 1966171168
    %v1512 = vunpack.c.0.s8 %v1511
    %v1513 = vlaneseq
    %v1514 = vshrl.u32 %v1513, 7
    %v1515 = vsub.s32 %v1512, %v1514
    %v1516 = vrot.slane %v1500, %v1515
    %v1518 = vunpack.c.l.s4 1966171168
    %v1519 = vunpack.c.0.s8 %v1518
    %v1520 = vlaneseq
    %v1521 = vshrl.u32 %v1520, 7
    %v1522 = vsub.s32 %v1519, %v1521
    %v1523 = vrot.slane %v1501, %v1522
    %v1525 = vunpack.c.l.s4 1966171168
    %v1526 = vunpack.c.0.s8 %v1525
    %v1527 = vlaneseq
    %v1528 = vshrl.u32 %v1527, 7
    %v1529 = vsub.s32 %v1526, %v1528
    %v1530 = vrot.slane %v1502, %v1529
    %v1531 = vcombine.low %v1509, %v1516
    %v1532 = vcombine.low %v1523, %v1530
    %v1534 = vunpack.c.l.s4 1966171168
    %v1535 = vunpack.c.0.s8 %v1534
    %v1536 = vlaneseq
    %v1537 = vshrl.u32 %v1536, 7
    %v1538 = vsub.s32 %v1535, %v1537
    %v1539 = vrot.slane %v1531, %v1538
    %v1541 = vunpack.c.l.s4 1966171168
    %v1542 = vunpack.c.0.s8 %v1541
    %v1543 = vlaneseq
    %v1544 = vshrl.u32 %v1543, 7
    %v1545 = vsub.s32 %v1542, %v1544
    %v1546 = vrot.slane %v1532, %v1545
    %v1547 = vcombine.low %v1539, %v1546
    %v1548 = vcombine.low %v818, %v822
    %v1549 = vcombine.low %v826, %v830
    %v1550 = vcombine.low %v834, %v838
    %v1551 = vcombine.low %v842, %v846
    %v1553 = vunpack.c.l.s4 1966171168
    %v1554 = vunpack.c.0.s8 %v1553
    %v1555 = vlaneseq
    %v1556 = vshrl.u32 %v1555, 7
    %v1557 = vsub.s32 %v1554, %v1556
    %v1558 = vrot.slane %v1548, %v1557
    %v1560 = vunpack.c.l.s4 1966171168
    %v1561 = vunpack.c.0.s8 %v1560
    %v1562 = vlaneseq
    %v1563 = vshrl.u32 %v1562, 7
    %v1564 = vsub.s32 %v1561, %v1563
    %v1565 = vrot.slane %v1549, %v1564
    %v1567 = vunpack.c.l.s4 1966171168
    %v1568 = vunpack.c.0.s8 %v1567
    %v1569 = vlaneseq
    %v1570 = vshrl.u32 %v1569, 7
    %v1571 = vsub.s32 %v1568, %v1570
    %v1572 = vrot.slane %v1550, %v1571
    %v1574 = vunpack.c.l.s4 1966171168
    %v1575 = vunpack.c.0.s8 %v1574
    %v1576 = vlaneseq
    %v1577 = vshrl.u32 %v1576, 7
    %v1578 = vsub.s32 %v1575, %v1577
    %v1579 = vrot.slane %v1551, %v1578
    %v1580 = vcombine.low %v1558, %v1565
    %v1581 = vcombine.low %v1572, %v1579
    %v1583 = vunpack.c.l.s4 1966171168
    %v1584 = vunpack.c.0.s8 %v1583
    %v1585 = vlaneseq
    %v1586 = vshrl.u32 %v1585, 7
    %v1587 = vsub.s32 %v1584, %v1586
    %v1588 = vrot.slane %v1580, %v1587
    %v1590 = vunpack.c.l.s4 1966171168
    %v1591 = vunpack.c.0.s8 %v1590
    %v1592 = vlaneseq
    %v1593 = vshrl.u32 %v1592, 7
    %v1594 = vsub.s32 %v1591, %v1593
    %v1595 = vrot.slane %v1581, %v1594
    %v1596 = vcombine.low %v1588, %v1595
    %v1597 = vcombine.low %v850, %v854
    %v1598 = vcombine.low %v858, %v862
    %v1599 = vcombine.low %v866, %v870
    %v1600 = vcombine.low %v874, %v878
    %v1602 = vunpack.c.l.s4 1966171168
    %v1603 = vunpack.c.0.s8 %v1602
    %v1604 = vlaneseq
    %v1605 = vshrl.u32 %v1604, 7
    %v1606 = vsub.s32 %v1603, %v1605
    %v1607 = vrot.slane %v1597, %v1606
    %v1609 = vunpack.c.l.s4 1966171168
    %v1610 = vunpack.c.0.s8 %v1609
    %v1611 = vlaneseq
    %v1612 = vshrl.u32 %v1611, 7
    %v1613 = vsub.s32 %v1610, %v1612
    %v1614 = vrot.slane %v1598, %v1613
    %v1616 = vunpack.c.l.s4 1966171168
    %v1617 = vunpack.c.0.s8 %v1616
    %v1618 = vlaneseq
    %v1619 = vshrl.u32 %v1618, 7
    %v1620 = vsub.s32 %v1617, %v1619
    %v1621 = vrot.slane %v1599, %v1620
    %v1623 = vunpack.c.l.s4 1966171168
    %v1624 = vunpack.c.0.s8 %v1623
    %v1625 = vlaneseq
    %v1626 = vshrl.u32 %v1625, 7
    %v1627 = vsub.s32 %v1624, %v1626
    %v1628 = vrot.slane %v1600, %v1627
    %v1629 = vcombine.low %v1607, %v1614
    %v1630 = vcombine.low %v1621, %v1628
    %v1632 = vunpack.c.l.s4 1966171168
    %v1633 = vunpack.c.0.s8 %v1632
    %v1634 = vlaneseq
    %v1635 = vshrl.u32 %v1634, 7
    %v1636 = vsub.s32 %v1633, %v1635
    %v1637 = vrot.slane %v1629, %v1636
    %v1639 = vunpack.c.l.s4 1966171168
    %v1640 = vunpack.c.0.s8 %v1639
    %v1641 = vlaneseq
    %v1642 = vshrl.u32 %v1641, 7
    %v1643 = vsub.s32 %v1640, %v1642
    %v1644 = vrot.slane %v1630, %v1643
    %v1645 = vcombine.low %v1637, %v1644
    %v1646 = vcombine.low %v882, %v886
    %v1647 = vcombine.low %v890, %v894
    %v1648 = vcombine.low %v898, %v902
    %v1649 = vcombine.low %v906, %v910
    %v1651 = vunpack.c.l.s4 1966171168
    %v1652 = vunpack.c.0.s8 %v1651
    %v1653 = vlaneseq
    %v1654 = vshrl.u32 %v1653, 7
    %v1655 = vsub.s32 %v1652, %v1654
    %v1656 = vrot.slane %v1646, %v1655
    %v1658 = vunpack.c.l.s4 1966171168
    %v1659 = vunpack.c.0.s8 %v1658
    %v1660 = vlaneseq
    %v1661 = vshrl.u32 %v1660, 7
    %v1662 = vsub.s32 %v1659, %v1661
    %v1663 = vrot.slane %v1647, %v1662
    %v1665 = vunpack.c.l.s4 1966171168
    %v1666 = vunpack.c.0.s8 %v1665
    %v1667 = vlaneseq
    %v1668 = vshrl.u32 %v1667, 7
    %v1669 = vsub.s32 %v1666, %v1668
    %v1670 = vrot.slane %v1648, %v1669
    %v1672 = vunpack.c.l.s4 1966171168
    %v1673 = vunpack.c.0.s8 %v1672
    %v1674 = vlaneseq
    %v1675 = vshrl.u32 %v1674, 7
    %v1676 = vsub.s32 %v1673, %v1675
    %v1677 = vrot.slane %v1649, %v1676
    %v1678 = vcombine.low %v1656, %v1663
    %v1679 = vcombine.low %v1670, %v1677
    %v1681 = vunpack.c.l.s4 1966171168
    %v1682 = vunpack.c.0.s8 %v1681
    %v1683 = vlaneseq
    %v1684 = vshrl.u32 %v1683, 7
    %v1685 = vsub.s32 %v1682, %v1684
    %v1686 = vrot.slane %v1678, %v1685
    %v1688 = vunpack.c.l.s4 1966171168
    %v1689 = vunpack.c.0.s8 %v1688
    %v1690 = vlaneseq
    %v1691 = vshrl.u32 %v1690, 7
    %v1692 = vsub.s32 %v1689, %v1691
    %v1693 = vrot.slane %v1679, %v1692
    %v1694 = vcombine.low %v1686, %v1693
    %1695 = vset.pattern.permute.xlu0 0
    %1696 = vperm.xlu0 %1695, %v959
    %v1697 = vpop.permute.xlu0 %1696
    %1698 = vset.pattern.permute.xlu0 0
    %1699 = vperm.xlu0 %1698, %v1008
    %v1700 = vpop.permute.xlu0 %1699
    %1701 = vset.pattern.permute.xlu0 0
    %1702 = vperm.xlu0 %1701, %v1057
    %v1703 = vpop.permute.xlu0 %1702
    %1704 = vset.pattern.permute.xlu0 0
    %1705 = vperm.xlu0 %1704, %v1106
    %v1706 = vpop.permute.xlu0 %1705
    %1707 = vset.pattern.permute.xlu0 0
    %1708 = vperm.xlu0 %1707, %v1155
    %v1709 = vpop.permute.xlu0 %1708
    %1710 = vset.pattern.permute.xlu0 0
    %1711 = vperm.xlu0 %1710, %v1204
    %v1712 = vpop.permute.xlu0 %1711
    %1713 = vset.pattern.permute.xlu0 0
    %1714 = vperm.xlu0 %1713, %v1253
    %v1715 = vpop.permute.xlu0 %1714
    %1716 = vset.pattern.permute.xlu0 0
    %1717 = vperm.xlu0 %1716, %v1302
    %v1718 = vpop.permute.xlu0 %1717
    %1719 = vset.pattern.permute.xlu0 0
    %1720 = vperm.xlu0 %1719, %v1351
    %v1721 = vpop.permute.xlu0 %1720
    %1722 = vset.pattern.permute.xlu0 0
    %1723 = vperm.xlu0 %1722, %v1400
    %v1724 = vpop.permute.xlu0 %1723
    %1725 = vset.pattern.permute.xlu0 0
    %1726 = vperm.xlu0 %1725, %v1449
    %v1727 = vpop.permute.xlu0 %1726
    %1728 = vset.pattern.permute.xlu0 0
    %1729 = vperm.xlu0 %1728, %v1498
    %v1730 = vpop.permute.xlu0 %1729
    %1731 = vset.pattern.permute.xlu0 0
    %1732 = vperm.xlu0 %1731, %v1547
    %v1733 = vpop.permute.xlu0 %1732
    %1734 = vset.pattern.permute.xlu0 0
    %1735 = vperm.xlu0 %1734, %v1596
    %v1736 = vpop.permute.xlu0 %1735
    %1737 = vset.pattern.permute.xlu0 0
    %1738 = vperm.xlu0 %1737, %v1645
    %v1739 = vpop.permute.xlu0 %1738
    %1740 = vset.pattern.permute.xlu0 0
    %1741 = vperm.xlu0 %1740, %v1694
    %v1742 = vpop.permute.xlu0 %1741
    %v1743 = vlaneseq
    %v1744 = vand.u32 %v1743, 127
    %v1745 = vlaneseq
    %v1746 = vshrl.u32 %v1745, 7
    %v1747 = vsub.s32 %v1744, %v1746
    %v1748 = vrot.slane %v1697, %v1747
    %v1749 = vadd.s32 %v1744, 4294967288
    %v1750 = vlaneseq
    %v1751 = vshrl.u32 %v1750, 7
    %v1752 = vsub.s32 %v1749, %v1751
    %v1753 = vrot.slane %v1700, %v1752
    %vm1754 = vcmask 130112
    %v1755 = vsel %vm1754, %v1753, %v1748
    %v1756 = vadd.s32 %v1744, 4294967280
    %v1757 = vlaneseq
    %v1758 = vshrl.u32 %v1757, 7
    %v1759 = vsub.s32 %v1756, %v1758
    %v1760 = vrot.slane %v1703, %v1759
    %vm1761 = vcmask 195712
    %v1762 = vsel %vm1761, %v1760, %v1755
    %v1763 = vadd.s32 %v1744, 4294967272
    %v1764 = vlaneseq
    %v1765 = vshrl.u32 %v1764, 7
    %v1766 = vsub.s32 %v1763, %v1765
    %v1767 = vrot.slane %v1706, %v1766
    %vm1768 = vcmask 261312
    %v1769 = vsel %vm1768, %v1767, %v1762
    %v1770 = vadd.s32 %v1744, 4294967264
    %v1771 = vlaneseq
    %v1772 = vshrl.u32 %v1771, 7
    %v1773 = vsub.s32 %v1770, %v1772
    %v1774 = vrot.slane %v1709, %v1773
    %vm1775 = vcmask 326912
    %v1776 = vsel %vm1775, %v1774, %v1769
    %v1777 = vadd.s32 %v1744, 4294967256
    %v1778 = vlaneseq
    %v1779 = vshrl.u32 %v1778, 7
    %v1780 = vsub.s32 %v1777, %v1779
    %v1781 = vrot.slane %v1712, %v1780
    %vm1782 = vcmask 392512
    %v1783 = vsel %vm1782, %v1781, %v1776
    %v1784 = vadd.s32 %v1744, 4294967248
    %v1785 = vlaneseq
    %v1786 = vshrl.u32 %v1785, 7
    %v1787 = vsub.s32 %v1784, %v1786
    %v1788 = vrot.slane %v1715, %v1787
    %vm1789 = vcmask 458112
    %v1790 = vsel %vm1789, %v1788, %v1783
    %v1791 = vadd.s32 %v1744, 4294967240
    %v1792 = vlaneseq
    %v1793 = vshrl.u32 %v1792, 7
    %v1794 = vsub.s32 %v1791, %v1793
    %v1795 = vrot.slane %v1718, %v1794
    %vm1796 = vcmask 523712
    %v1797 = vsel %vm1796, %v1795, %v1790
    %v1798 = vadd.s32 %v1744, 4294967232
    %v1799 = vlaneseq
    %v1800 = vshrl.u32 %v1799, 7
    %v1801 = vsub.s32 %v1798, %v1800
    %v1802 = vrot.slane %v1721, %v1801
    %vm1803 = vcmask 589312
    %v1804 = vsel %vm1803, %v1802, %v1797
    %v1805 = vadd.s32 %v1744, 4294967224
    %v1806 = vlaneseq
    %v1807 = vshrl.u32 %v1806, 7
    %v1808 = vsub.s32 %v1805, %v1807
    %v1809 = vrot.slane %v1724, %v1808
    %vm1810 = vcmask 654912
    %v1811 = vsel %vm1810, %v1809, %v1804
    %v1812 = vadd.s32 %v1744, 4294967216
    %v1813 = vlaneseq
    %v1814 = vshrl.u32 %v1813, 7
    %v1815 = vsub.s32 %v1812, %v1814
    %v1816 = vrot.slane %v1727, %v1815
    %vm1817 = vcmask 720512
    %v1818 = vsel %vm1817, %v1816, %v1811
    %v1819 = vadd.s32 %v1744, 4294967208
    %v1820 = vlaneseq
    %v1821 = vshrl.u32 %v1820, 7
    %v1822 = vsub.s32 %v1819, %v1821
    %v1823 = vrot.slane %v1730, %v1822
    %vm1824 = vcmask 786112
    %v1825 = vsel %vm1824, %v1823, %v1818
    %v1826 = vadd.s32 %v1744, 4294967200
    %v1827 = vlaneseq
    %v1828 = vshrl.u32 %v1827, 7
    %v1829 = vsub.s32 %v1826, %v1828
    %v1830 = vrot.slane %v1733, %v1829
    %vm1831 = vcmask 851712
    %v1832 = vsel %vm1831, %v1830, %v1825
    %v1833 = vadd.s32 %v1744, 4294967192
    %v1834 = vlaneseq
    %v1835 = vshrl.u32 %v1834, 7
    %v1836 = vsub.s32 %v1833, %v1835
    %v1837 = vrot.slane %v1736, %v1836
    %vm1838 = vcmask 917312
    %v1839 = vsel %vm1838, %v1837, %v1832
    %v1840 = vadd.s32 %v1744, 4294967184
    %v1841 = vlaneseq
    %v1842 = vshrl.u32 %v1841, 7
    %v1843 = vsub.s32 %v1840, %v1842
    %v1844 = vrot.slane %v1739, %v1843
    %vm1845 = vcmask 982912
    %v1846 = vsel %vm1845, %v1844, %v1839
    %v1847 = vadd.s32 %v1744, 4294967176
    %v1848 = vlaneseq
    %v1849 = vshrl.u32 %v1848, 7
    %v1850 = vsub.s32 %v1847, %v1849
    %v1851 = vrot.slane %v1742, %v1850
    %vm1852 = vcmask 1048512
    %v1853 = vsel %vm1852, %v1851, %v1846
    %v1855 = vunpack.c.l.s4 1966171168
    %v1856 = vunpack.c.0.s8 %v1855
    %v1857 = vlaneseq
    %v1858 = vshrl.u32 %v1857, 7
    %v1859 = vsub.s32 %v1856, %v1858
    %v1860 = vrot.slane %v1853, %v1859
    %v1862 = vunpack.c.l.s4 1966171168
    %v1863 = vunpack.c.0.s8 %v1862
    %v1864 = vlaneseq
    %v1865 = vshrl.u32 %v1864, 7
    %v1866 = vsub.s32 %v1863, %v1865
    %v1867 = vrot.slane %v1860, %v1866
    %v1869 = vmul.f32 %v382, %v1867
    %v1870 = vmul.f32 %v366, %v366
    %v1871 = vmul.f32 %v367, %v367
    %v1872 = vmul.f32 %v368, %v368
    %v1873 = vmul.f32 %v369, %v369
    %v1874 = vmul.f32 %v370, %v370
    %v1875 = vmul.f32 %v371, %v371
    %v1876 = vmul.f32 %v372, %v372
    %v1877 = vmul.f32 %v373, %v373
    %v1878 = vmul.f32 %v374, %v374
    %v1879 = vmul.f32 %v375, %v375
    %v1880 = vmul.f32 %v376, %v376
    %v1881 = vmul.f32 %v377, %v377
    %v1882 = vmul.f32 %v378, %v378
    %v1883 = vmul.f32 %v379, %v379
    %v1884 = vmul.f32 %v380, %v380
    %v1885 = vmul.f32 %v381, %v381
    %v1902 = vlaneseq
    %v1903 = vshrl.u32 %v1902, 7
    %v1904 = vsub.s32 0, %v1903
    %v1905 = vrot.slane %v1870, %v1904
    %v1906 = vlaneseq
    %v1907 = vshrl.u32 %v1906, 7
    %v1908 = vsub.s32 1, %v1907
    %v1909 = vrot.slane %v1870, %v1908
    %v1910 = vlaneseq
    %v1911 = vshrl.u32 %v1910, 7
    %v1912 = vsub.s32 2, %v1911
    %v1913 = vrot.slane %v1870, %v1912
    %v1914 = vlaneseq
    %v1915 = vshrl.u32 %v1914, 7
    %v1916 = vsub.s32 3, %v1915
    %v1917 = vrot.slane %v1870, %v1916
    %v1918 = vlaneseq
    %v1919 = vshrl.u32 %v1918, 7
    %v1920 = vsub.s32 4, %v1919
    %v1921 = vrot.slane %v1870, %v1920
    %v1922 = vlaneseq
    %v1923 = vshrl.u32 %v1922, 7
    %v1924 = vsub.s32 5, %v1923
    %v1925 = vrot.slane %v1870, %v1924
    %v1926 = vlaneseq
    %v1927 = vshrl.u32 %v1926, 7
    %v1928 = vsub.s32 6, %v1927
    %v1929 = vrot.slane %v1870, %v1928
    %v1930 = vlaneseq
    %v1931 = vshrl.u32 %v1930, 7
    %v1932 = vsub.s32 7, %v1931
    %v1933 = vrot.slane %v1870, %v1932
    %v1934 = vlaneseq
    %v1935 = vshrl.u32 %v1934, 7
    %v1936 = vsub.s32 0, %v1935
    %v1937 = vrot.slane %v1871, %v1936
    %v1938 = vlaneseq
    %v1939 = vshrl.u32 %v1938, 7
    %v1940 = vsub.s32 1, %v1939
    %v1941 = vrot.slane %v1871, %v1940
    %v1942 = vlaneseq
    %v1943 = vshrl.u32 %v1942, 7
    %v1944 = vsub.s32 2, %v1943
    %v1945 = vrot.slane %v1871, %v1944
    %v1946 = vlaneseq
    %v1947 = vshrl.u32 %v1946, 7
    %v1948 = vsub.s32 3, %v1947
    %v1949 = vrot.slane %v1871, %v1948
    %v1950 = vlaneseq
    %v1951 = vshrl.u32 %v1950, 7
    %v1952 = vsub.s32 4, %v1951
    %v1953 = vrot.slane %v1871, %v1952
    %v1954 = vlaneseq
    %v1955 = vshrl.u32 %v1954, 7
    %v1956 = vsub.s32 5, %v1955
    %v1957 = vrot.slane %v1871, %v1956
    %v1958 = vlaneseq
    %v1959 = vshrl.u32 %v1958, 7
    %v1960 = vsub.s32 6, %v1959
    %v1961 = vrot.slane %v1871, %v1960
    %v1962 = vlaneseq
    %v1963 = vshrl.u32 %v1962, 7
    %v1964 = vsub.s32 7, %v1963
    %v1965 = vrot.slane %v1871, %v1964
    %v1966 = vlaneseq
    %v1967 = vshrl.u32 %v1966, 7
    %v1968 = vsub.s32 0, %v1967
    %v1969 = vrot.slane %v1872, %v1968
    %v1970 = vlaneseq
    %v1971 = vshrl.u32 %v1970, 7
    %v1972 = vsub.s32 1, %v1971
    %v1973 = vrot.slane %v1872, %v1972
    %v1974 = vlaneseq
    %v1975 = vshrl.u32 %v1974, 7
    %v1976 = vsub.s32 2, %v1975
    %v1977 = vrot.slane %v1872, %v1976
    %v1978 = vlaneseq
    %v1979 = vshrl.u32 %v1978, 7
    %v1980 = vsub.s32 3, %v1979
    %v1981 = vrot.slane %v1872, %v1980
    %v1982 = vlaneseq
    %v1983 = vshrl.u32 %v1982, 7
    %v1984 = vsub.s32 4, %v1983
    %v1985 = vrot.slane %v1872, %v1984
    %v1986 = vlaneseq
    %v1987 = vshrl.u32 %v1986, 7
    %v1988 = vsub.s32 5, %v1987
    %v1989 = vrot.slane %v1872, %v1988
    %v1990 = vlaneseq
    %v1991 = vshrl.u32 %v1990, 7
    %v1992 = vsub.s32 6, %v1991
    %v1993 = vrot.slane %v1872, %v1992
    %v1994 = vlaneseq
    %v1995 = vshrl.u32 %v1994, 7
    %v1996 = vsub.s32 7, %v1995
    %v1997 = vrot.slane %v1872, %v1996
    %v1998 = vlaneseq
    %v1999 = vshrl.u32 %v1998, 7
    %v2000 = vsub.s32 0, %v1999
    %v2001 = vrot.slane %v1873, %v2000
    %v2002 = vlaneseq
    %v2003 = vshrl.u32 %v2002, 7
    %v2004 = vsub.s32 1, %v2003
    %v2005 = vrot.slane %v1873, %v2004
    %v2006 = vlaneseq
    %v2007 = vshrl.u32 %v2006, 7
    %v2008 = vsub.s32 2, %v2007
    %v2009 = vrot.slane %v1873, %v2008
    %v2010 = vlaneseq
    %v2011 = vshrl.u32 %v2010, 7
    %v2012 = vsub.s32 3, %v2011
    %v2013 = vrot.slane %v1873, %v2012
    %v2014 = vlaneseq
    %v2015 = vshrl.u32 %v2014, 7
    %v2016 = vsub.s32 4, %v2015
    %v2017 = vrot.slane %v1873, %v2016
    %v2018 = vlaneseq
    %v2019 = vshrl.u32 %v2018, 7
    %v2020 = vsub.s32 5, %v2019
    %v2021 = vrot.slane %v1873, %v2020
    %v2022 = vlaneseq
    %v2023 = vshrl.u32 %v2022, 7
    %v2024 = vsub.s32 6, %v2023
    %v2025 = vrot.slane %v1873, %v2024
    %v2026 = vlaneseq
    %v2027 = vshrl.u32 %v2026, 7
    %v2028 = vsub.s32 7, %v2027
    %v2029 = vrot.slane %v1873, %v2028
    %v2030 = vlaneseq
    %v2031 = vshrl.u32 %v2030, 7
    %v2032 = vsub.s32 0, %v2031
    %v2033 = vrot.slane %v1874, %v2032
    %v2034 = vlaneseq
    %v2035 = vshrl.u32 %v2034, 7
    %v2036 = vsub.s32 1, %v2035
    %v2037 = vrot.slane %v1874, %v2036
    %v2038 = vlaneseq
    %v2039 = vshrl.u32 %v2038, 7
    %v2040 = vsub.s32 2, %v2039
    %v2041 = vrot.slane %v1874, %v2040
    %v2042 = vlaneseq
    %v2043 = vshrl.u32 %v2042, 7
    %v2044 = vsub.s32 3, %v2043
    %v2045 = vrot.slane %v1874, %v2044
    %v2046 = vlaneseq
    %v2047 = vshrl.u32 %v2046, 7
    %v2048 = vsub.s32 4, %v2047
    %v2049 = vrot.slane %v1874, %v2048
    %v2050 = vlaneseq
    %v2051 = vshrl.u32 %v2050, 7
    %v2052 = vsub.s32 5, %v2051
    %v2053 = vrot.slane %v1874, %v2052
    %v2054 = vlaneseq
    %v2055 = vshrl.u32 %v2054, 7
    %v2056 = vsub.s32 6, %v2055
    %v2057 = vrot.slane %v1874, %v2056
    %v2058 = vlaneseq
    %v2059 = vshrl.u32 %v2058, 7
    %v2060 = vsub.s32 7, %v2059
    %v2061 = vrot.slane %v1874, %v2060
    %v2062 = vlaneseq
    %v2063 = vshrl.u32 %v2062, 7
    %v2064 = vsub.s32 0, %v2063
    %v2065 = vrot.slane %v1875, %v2064
    %v2066 = vlaneseq
    %v2067 = vshrl.u32 %v2066, 7
    %v2068 = vsub.s32 1, %v2067
    %v2069 = vrot.slane %v1875, %v2068
    %v2070 = vlaneseq
    %v2071 = vshrl.u32 %v2070, 7
    %v2072 = vsub.s32 2, %v2071
    %v2073 = vrot.slane %v1875, %v2072
    %v2074 = vlaneseq
    %v2075 = vshrl.u32 %v2074, 7
    %v2076 = vsub.s32 3, %v2075
    %v2077 = vrot.slane %v1875, %v2076
    %v2078 = vlaneseq
    %v2079 = vshrl.u32 %v2078, 7
    %v2080 = vsub.s32 4, %v2079
    %v2081 = vrot.slane %v1875, %v2080
    %v2082 = vlaneseq
    %v2083 = vshrl.u32 %v2082, 7
    %v2084 = vsub.s32 5, %v2083
    %v2085 = vrot.slane %v1875, %v2084
    %v2086 = vlaneseq
    %v2087 = vshrl.u32 %v2086, 7
    %v2088 = vsub.s32 6, %v2087
    %v2089 = vrot.slane %v1875, %v2088
    %v2090 = vlaneseq
    %v2091 = vshrl.u32 %v2090, 7
    %v2092 = vsub.s32 7, %v2091
    %v2093 = vrot.slane %v1875, %v2092
    %v2094 = vlaneseq
    %v2095 = vshrl.u32 %v2094, 7
    %v2096 = vsub.s32 0, %v2095
    %v2097 = vrot.slane %v1876, %v2096
    %v2098 = vlaneseq
    %v2099 = vshrl.u32 %v2098, 7
    %v2100 = vsub.s32 1, %v2099
    %v2101 = vrot.slane %v1876, %v2100
    %v2102 = vlaneseq
    %v2103 = vshrl.u32 %v2102, 7
    %v2104 = vsub.s32 2, %v2103
    %v2105 = vrot.slane %v1876, %v2104
    %v2106 = vlaneseq
    %v2107 = vshrl.u32 %v2106, 7
    %v2108 = vsub.s32 3, %v2107
    %v2109 = vrot.slane %v1876, %v2108
    %v2110 = vlaneseq
    %v2111 = vshrl.u32 %v2110, 7
    %v2112 = vsub.s32 4, %v2111
    %v2113 = vrot.slane %v1876, %v2112
    %v2114 = vlaneseq
    %v2115 = vshrl.u32 %v2114, 7
    %v2116 = vsub.s32 5, %v2115
    %v2117 = vrot.slane %v1876, %v2116
    %v2118 = vlaneseq
    %v2119 = vshrl.u32 %v2118, 7
    %v2120 = vsub.s32 6, %v2119
    %v2121 = vrot.slane %v1876, %v2120
    %v2122 = vlaneseq
    %v2123 = vshrl.u32 %v2122, 7
    %v2124 = vsub.s32 7, %v2123
    %v2125 = vrot.slane %v1876, %v2124
    %v2126 = vlaneseq
    %v2127 = vshrl.u32 %v2126, 7
    %v2128 = vsub.s32 0, %v2127
    %v2129 = vrot.slane %v1877, %v2128
    %v2130 = vlaneseq
    %v2131 = vshrl.u32 %v2130, 7
    %v2132 = vsub.s32 1, %v2131
    %v2133 = vrot.slane %v1877, %v2132
    %v2134 = vlaneseq
    %v2135 = vshrl.u32 %v2134, 7
    %v2136 = vsub.s32 2, %v2135
    %v2137 = vrot.slane %v1877, %v2136
    %v2138 = vlaneseq
    %v2139 = vshrl.u32 %v2138, 7
    %v2140 = vsub.s32 3, %v2139
    %v2141 = vrot.slane %v1877, %v2140
    %v2142 = vlaneseq
    %v2143 = vshrl.u32 %v2142, 7
    %v2144 = vsub.s32 4, %v2143
    %v2145 = vrot.slane %v1877, %v2144
    %v2146 = vlaneseq
    %v2147 = vshrl.u32 %v2146, 7
    %v2148 = vsub.s32 5, %v2147
    %v2149 = vrot.slane %v1877, %v2148
    %v2150 = vlaneseq
    %v2151 = vshrl.u32 %v2150, 7
    %v2152 = vsub.s32 6, %v2151
    %v2153 = vrot.slane %v1877, %v2152
    %v2154 = vlaneseq
    %v2155 = vshrl.u32 %v2154, 7
    %v2156 = vsub.s32 7, %v2155
    %v2157 = vrot.slane %v1877, %v2156
    %v2158 = vlaneseq
    %v2159 = vshrl.u32 %v2158, 7
    %v2160 = vsub.s32 0, %v2159
    %v2161 = vrot.slane %v1878, %v2160
    %v2162 = vlaneseq
    %v2163 = vshrl.u32 %v2162, 7
    %v2164 = vsub.s32 1, %v2163
    %v2165 = vrot.slane %v1878, %v2164
    %v2166 = vlaneseq
    %v2167 = vshrl.u32 %v2166, 7
    %v2168 = vsub.s32 2, %v2167
    %v2169 = vrot.slane %v1878, %v2168
    %v2170 = vlaneseq
    %v2171 = vshrl.u32 %v2170, 7
    %v2172 = vsub.s32 3, %v2171
    %v2173 = vrot.slane %v1878, %v2172
    %v2174 = vlaneseq
    %v2175 = vshrl.u32 %v2174, 7
    %v2176 = vsub.s32 4, %v2175
    %v2177 = vrot.slane %v1878, %v2176
    %v2178 = vlaneseq
    %v2179 = vshrl.u32 %v2178, 7
    %v2180 = vsub.s32 5, %v2179
    %v2181 = vrot.slane %v1878, %v2180
    %v2182 = vlaneseq
    %v2183 = vshrl.u32 %v2182, 7
    %v2184 = vsub.s32 6, %v2183
    %v2185 = vrot.slane %v1878, %v2184
    %v2186 = vlaneseq
    %v2187 = vshrl.u32 %v2186, 7
    %v2188 = vsub.s32 7, %v2187
    %v2189 = vrot.slane %v1878, %v2188
    %v2190 = vlaneseq
    %v2191 = vshrl.u32 %v2190, 7
    %v2192 = vsub.s32 0, %v2191
    %v2193 = vrot.slane %v1879, %v2192
    %v2194 = vlaneseq
    %v2195 = vshrl.u32 %v2194, 7
    %v2196 = vsub.s32 1, %v2195
    %v2197 = vrot.slane %v1879, %v2196
    %v2198 = vlaneseq
    %v2199 = vshrl.u32 %v2198, 7
    %v2200 = vsub.s32 2, %v2199
    %v2201 = vrot.slane %v1879, %v2200
    %v2202 = vlaneseq
    %v2203 = vshrl.u32 %v2202, 7
    %v2204 = vsub.s32 3, %v2203
    %v2205 = vrot.slane %v1879, %v2204
    %v2206 = vlaneseq
    %v2207 = vshrl.u32 %v2206, 7
    %v2208 = vsub.s32 4, %v2207
    %v2209 = vrot.slane %v1879, %v2208
    %v2210 = vlaneseq
    %v2211 = vshrl.u32 %v2210, 7
    %v2212 = vsub.s32 5, %v2211
    %v2213 = vrot.slane %v1879, %v2212
    %v2214 = vlaneseq
    %v2215 = vshrl.u32 %v2214, 7
    %v2216 = vsub.s32 6, %v2215
    %v2217 = vrot.slane %v1879, %v2216
    %v2218 = vlaneseq
    %v2219 = vshrl.u32 %v2218, 7
    %v2220 = vsub.s32 7, %v2219
    %v2221 = vrot.slane %v1879, %v2220
    %v2222 = vlaneseq
    %v2223 = vshrl.u32 %v2222, 7
    %v2224 = vsub.s32 0, %v2223
    %v2225 = vrot.slane %v1880, %v2224
    %v2226 = vlaneseq
    %v2227 = vshrl.u32 %v2226, 7
    %v2228 = vsub.s32 1, %v2227
    %v2229 = vrot.slane %v1880, %v2228
    %v2230 = vlaneseq
    %v2231 = vshrl.u32 %v2230, 7
    %v2232 = vsub.s32 2, %v2231
    %v2233 = vrot.slane %v1880, %v2232
    %v2234 = vlaneseq
    %v2235 = vshrl.u32 %v2234, 7
    %v2236 = vsub.s32 3, %v2235
    %v2237 = vrot.slane %v1880, %v2236
    %v2238 = vlaneseq
    %v2239 = vshrl.u32 %v2238, 7
    %v2240 = vsub.s32 4, %v2239
    %v2241 = vrot.slane %v1880, %v2240
    %v2242 = vlaneseq
    %v2243 = vshrl.u32 %v2242, 7
    %v2244 = vsub.s32 5, %v2243
    %v2245 = vrot.slane %v1880, %v2244
    %v2246 = vlaneseq
    %v2247 = vshrl.u32 %v2246, 7
    %v2248 = vsub.s32 6, %v2247
    %v2249 = vrot.slane %v1880, %v2248
    %v2250 = vlaneseq
    %v2251 = vshrl.u32 %v2250, 7
    %v2252 = vsub.s32 7, %v2251
    %v2253 = vrot.slane %v1880, %v2252
    %v2254 = vlaneseq
    %v2255 = vshrl.u32 %v2254, 7
    %v2256 = vsub.s32 0, %v2255
    %v2257 = vrot.slane %v1881, %v2256
    %v2258 = vlaneseq
    %v2259 = vshrl.u32 %v2258, 7
    %v2260 = vsub.s32 1, %v2259
    %v2261 = vrot.slane %v1881, %v2260
    %v2262 = vlaneseq
    %v2263 = vshrl.u32 %v2262, 7
    %v2264 = vsub.s32 2, %v2263
    %v2265 = vrot.slane %v1881, %v2264
    %v2266 = vlaneseq
    %v2267 = vshrl.u32 %v2266, 7
    %v2268 = vsub.s32 3, %v2267
    %v2269 = vrot.slane %v1881, %v2268
    %v2270 = vlaneseq
    %v2271 = vshrl.u32 %v2270, 7
    %v2272 = vsub.s32 4, %v2271
    %v2273 = vrot.slane %v1881, %v2272
    %v2274 = vlaneseq
    %v2275 = vshrl.u32 %v2274, 7
    %v2276 = vsub.s32 5, %v2275
    %v2277 = vrot.slane %v1881, %v2276
    %v2278 = vlaneseq
    %v2279 = vshrl.u32 %v2278, 7
    %v2280 = vsub.s32 6, %v2279
    %v2281 = vrot.slane %v1881, %v2280
    %v2282 = vlaneseq
    %v2283 = vshrl.u32 %v2282, 7
    %v2284 = vsub.s32 7, %v2283
    %v2285 = vrot.slane %v1881, %v2284
    %v2286 = vlaneseq
    %v2287 = vshrl.u32 %v2286, 7
    %v2288 = vsub.s32 0, %v2287
    %v2289 = vrot.slane %v1882, %v2288
    %v2290 = vlaneseq
    %v2291 = vshrl.u32 %v2290, 7
    %v2292 = vsub.s32 1, %v2291
    %v2293 = vrot.slane %v1882, %v2292
    %v2294 = vlaneseq
    %v2295 = vshrl.u32 %v2294, 7
    %v2296 = vsub.s32 2, %v2295
    %v2297 = vrot.slane %v1882, %v2296
    %v2298 = vlaneseq
    %v2299 = vshrl.u32 %v2298, 7
    %v2300 = vsub.s32 3, %v2299
    %v2301 = vrot.slane %v1882, %v2300
    %v2302 = vlaneseq
    %v2303 = vshrl.u32 %v2302, 7
    %v2304 = vsub.s32 4, %v2303
    %v2305 = vrot.slane %v1882, %v2304
    %v2306 = vlaneseq
    %v2307 = vshrl.u32 %v2306, 7
    %v2308 = vsub.s32 5, %v2307
    %v2309 = vrot.slane %v1882, %v2308
    %v2310 = vlaneseq
    %v2311 = vshrl.u32 %v2310, 7
    %v2312 = vsub.s32 6, %v2311
    %v2313 = vrot.slane %v1882, %v2312
    %v2314 = vlaneseq
    %v2315 = vshrl.u32 %v2314, 7
    %v2316 = vsub.s32 7, %v2315
    %v2317 = vrot.slane %v1882, %v2316
    %v2318 = vlaneseq
    %v2319 = vshrl.u32 %v2318, 7
    %v2320 = vsub.s32 0, %v2319
    %v2321 = vrot.slane %v1883, %v2320
    %v2322 = vlaneseq
    %v2323 = vshrl.u32 %v2322, 7
    %v2324 = vsub.s32 1, %v2323
    %v2325 = vrot.slane %v1883, %v2324
    %v2326 = vlaneseq
    %v2327 = vshrl.u32 %v2326, 7
    %v2328 = vsub.s32 2, %v2327
    %v2329 = vrot.slane %v1883, %v2328
    %v2330 = vlaneseq
    %v2331 = vshrl.u32 %v2330, 7
    %v2332 = vsub.s32 3, %v2331
    %v2333 = vrot.slane %v1883, %v2332
    %v2334 = vlaneseq
    %v2335 = vshrl.u32 %v2334, 7
    %v2336 = vsub.s32 4, %v2335
    %v2337 = vrot.slane %v1883, %v2336
    %v2338 = vlaneseq
    %v2339 = vshrl.u32 %v2338, 7
    %v2340 = vsub.s32 5, %v2339
    %v2341 = vrot.slane %v1883, %v2340
    %v2342 = vlaneseq
    %v2343 = vshrl.u32 %v2342, 7
    %v2344 = vsub.s32 6, %v2343
    %v2345 = vrot.slane %v1883, %v2344
    %v2346 = vlaneseq
    %v2347 = vshrl.u32 %v2346, 7
    %v2348 = vsub.s32 7, %v2347
    %v2349 = vrot.slane %v1883, %v2348
    %v2350 = vlaneseq
    %v2351 = vshrl.u32 %v2350, 7
    %v2352 = vsub.s32 0, %v2351
    %v2353 = vrot.slane %v1884, %v2352
    %v2354 = vlaneseq
    %v2355 = vshrl.u32 %v2354, 7
    %v2356 = vsub.s32 1, %v2355
    %v2357 = vrot.slane %v1884, %v2356
    %v2358 = vlaneseq
    %v2359 = vshrl.u32 %v2358, 7
    %v2360 = vsub.s32 2, %v2359
    %v2361 = vrot.slane %v1884, %v2360
    %v2362 = vlaneseq
    %v2363 = vshrl.u32 %v2362, 7
    %v2364 = vsub.s32 3, %v2363
    %v2365 = vrot.slane %v1884, %v2364
    %v2366 = vlaneseq
    %v2367 = vshrl.u32 %v2366, 7
    %v2368 = vsub.s32 4, %v2367
    %v2369 = vrot.slane %v1884, %v2368
    %v2370 = vlaneseq
    %v2371 = vshrl.u32 %v2370, 7
    %v2372 = vsub.s32 5, %v2371
    %v2373 = vrot.slane %v1884, %v2372
    %v2374 = vlaneseq
    %v2375 = vshrl.u32 %v2374, 7
    %v2376 = vsub.s32 6, %v2375
    %v2377 = vrot.slane %v1884, %v2376
    %v2378 = vlaneseq
    %v2379 = vshrl.u32 %v2378, 7
    %v2380 = vsub.s32 7, %v2379
    %v2381 = vrot.slane %v1884, %v2380
    %v2382 = vlaneseq
    %v2383 = vshrl.u32 %v2382, 7
    %v2384 = vsub.s32 0, %v2383
    %v2385 = vrot.slane %v1885, %v2384
    %v2386 = vlaneseq
    %v2387 = vshrl.u32 %v2386, 7
    %v2388 = vsub.s32 1, %v2387
    %v2389 = vrot.slane %v1885, %v2388
    %v2390 = vlaneseq
    %v2391 = vshrl.u32 %v2390, 7
    %v2392 = vsub.s32 2, %v2391
    %v2393 = vrot.slane %v1885, %v2392
    %v2394 = vlaneseq
    %v2395 = vshrl.u32 %v2394, 7
    %v2396 = vsub.s32 3, %v2395
    %v2397 = vrot.slane %v1885, %v2396
    %v2398 = vlaneseq
    %v2399 = vshrl.u32 %v2398, 7
    %v2400 = vsub.s32 4, %v2399
    %v2401 = vrot.slane %v1885, %v2400
    %v2402 = vlaneseq
    %v2403 = vshrl.u32 %v2402, 7
    %v2404 = vsub.s32 5, %v2403
    %v2405 = vrot.slane %v1885, %v2404
    %v2406 = vlaneseq
    %v2407 = vshrl.u32 %v2406, 7
    %v2408 = vsub.s32 6, %v2407
    %v2409 = vrot.slane %v1885, %v2408
    %v2410 = vlaneseq
    %v2411 = vshrl.u32 %v2410, 7
    %v2412 = vsub.s32 7, %v2411
    %v2413 = vrot.slane %v1885, %v2412
    %v2414 = vcombine.low %v1905, %v1909
    %v2415 = vcombine.low %v1913, %v1917
    %v2416 = vcombine.low %v1921, %v1925
    %v2417 = vcombine.low %v1929, %v1933
    %v2419 = vunpack.c.l.s4 1966171168
    %v2420 = vunpack.c.0.s8 %v2419
    %v2421 = vlaneseq
    %v2422 = vshrl.u32 %v2421, 7
    %v2423 = vsub.s32 %v2420, %v2422
    %v2424 = vrot.slane %v2414, %v2423
    %v2426 = vunpack.c.l.s4 1966171168
    %v2427 = vunpack.c.0.s8 %v2426
    %v2428 = vlaneseq
    %v2429 = vshrl.u32 %v2428, 7
    %v2430 = vsub.s32 %v2427, %v2429
    %v2431 = vrot.slane %v2415, %v2430
    %v2433 = vunpack.c.l.s4 1966171168
    %v2434 = vunpack.c.0.s8 %v2433
    %v2435 = vlaneseq
    %v2436 = vshrl.u32 %v2435, 7
    %v2437 = vsub.s32 %v2434, %v2436
    %v2438 = vrot.slane %v2416, %v2437
    %v2440 = vunpack.c.l.s4 1966171168
    %v2441 = vunpack.c.0.s8 %v2440
    %v2442 = vlaneseq
    %v2443 = vshrl.u32 %v2442, 7
    %v2444 = vsub.s32 %v2441, %v2443
    %v2445 = vrot.slane %v2417, %v2444
    %v2446 = vcombine.low %v2424, %v2431
    %v2447 = vcombine.low %v2438, %v2445
    %v2449 = vunpack.c.l.s4 1966171168
    %v2450 = vunpack.c.0.s8 %v2449
    %v2451 = vlaneseq
    %v2452 = vshrl.u32 %v2451, 7
    %v2453 = vsub.s32 %v2450, %v2452
    %v2454 = vrot.slane %v2446, %v2453
    %v2456 = vunpack.c.l.s4 1966171168
    %v2457 = vunpack.c.0.s8 %v2456
    %v2458 = vlaneseq
    %v2459 = vshrl.u32 %v2458, 7
    %v2460 = vsub.s32 %v2457, %v2459
    %v2461 = vrot.slane %v2447, %v2460
    %v2462 = vcombine.low %v2454, %v2461
    %v2463 = vcombine.low %v1937, %v1941
    %v2464 = vcombine.low %v1945, %v1949
    %v2465 = vcombine.low %v1953, %v1957
    %v2466 = vcombine.low %v1961, %v1965
    %v2468 = vunpack.c.l.s4 1966171168
    %v2469 = vunpack.c.0.s8 %v2468
    %v2470 = vlaneseq
    %v2471 = vshrl.u32 %v2470, 7
    %v2472 = vsub.s32 %v2469, %v2471
    %v2473 = vrot.slane %v2463, %v2472
    %v2475 = vunpack.c.l.s4 1966171168
    %v2476 = vunpack.c.0.s8 %v2475
    %v2477 = vlaneseq
    %v2478 = vshrl.u32 %v2477, 7
    %v2479 = vsub.s32 %v2476, %v2478
    %v2480 = vrot.slane %v2464, %v2479
    %v2482 = vunpack.c.l.s4 1966171168
    %v2483 = vunpack.c.0.s8 %v2482
    %v2484 = vlaneseq
    %v2485 = vshrl.u32 %v2484, 7
    %v2486 = vsub.s32 %v2483, %v2485
    %v2487 = vrot.slane %v2465, %v2486
    %v2489 = vunpack.c.l.s4 1966171168
    %v2490 = vunpack.c.0.s8 %v2489
    %v2491 = vlaneseq
    %v2492 = vshrl.u32 %v2491, 7
    %v2493 = vsub.s32 %v2490, %v2492
    %v2494 = vrot.slane %v2466, %v2493
    %v2495 = vcombine.low %v2473, %v2480
    %v2496 = vcombine.low %v2487, %v2494
    %v2498 = vunpack.c.l.s4 1966171168
    %v2499 = vunpack.c.0.s8 %v2498
    %v2500 = vlaneseq
    %v2501 = vshrl.u32 %v2500, 7
    %v2502 = vsub.s32 %v2499, %v2501
    %v2503 = vrot.slane %v2495, %v2502
    %v2505 = vunpack.c.l.s4 1966171168
    %v2506 = vunpack.c.0.s8 %v2505
    %v2507 = vlaneseq
    %v2508 = vshrl.u32 %v2507, 7
    %v2509 = vsub.s32 %v2506, %v2508
    %v2510 = vrot.slane %v2496, %v2509
    %v2511 = vcombine.low %v2503, %v2510
    %v2512 = vcombine.low %v1969, %v1973
    %v2513 = vcombine.low %v1977, %v1981
    %v2514 = vcombine.low %v1985, %v1989
    %v2515 = vcombine.low %v1993, %v1997
    %v2517 = vunpack.c.l.s4 1966171168
    %v2518 = vunpack.c.0.s8 %v2517
    %v2519 = vlaneseq
    %v2520 = vshrl.u32 %v2519, 7
    %v2521 = vsub.s32 %v2518, %v2520
    %v2522 = vrot.slane %v2512, %v2521
    %v2524 = vunpack.c.l.s4 1966171168
    %v2525 = vunpack.c.0.s8 %v2524
    %v2526 = vlaneseq
    %v2527 = vshrl.u32 %v2526, 7
    %v2528 = vsub.s32 %v2525, %v2527
    %v2529 = vrot.slane %v2513, %v2528
    %v2531 = vunpack.c.l.s4 1966171168
    %v2532 = vunpack.c.0.s8 %v2531
    %v2533 = vlaneseq
    %v2534 = vshrl.u32 %v2533, 7
    %v2535 = vsub.s32 %v2532, %v2534
    %v2536 = vrot.slane %v2514, %v2535
    %v2538 = vunpack.c.l.s4 1966171168
    %v2539 = vunpack.c.0.s8 %v2538
    %v2540 = vlaneseq
    %v2541 = vshrl.u32 %v2540, 7
    %v2542 = vsub.s32 %v2539, %v2541
    %v2543 = vrot.slane %v2515, %v2542
    %v2544 = vcombine.low %v2522, %v2529
    %v2545 = vcombine.low %v2536, %v2543
    %v2547 = vunpack.c.l.s4 1966171168
    %v2548 = vunpack.c.0.s8 %v2547
    %v2549 = vlaneseq
    %v2550 = vshrl.u32 %v2549, 7
    %v2551 = vsub.s32 %v2548, %v2550
    %v2552 = vrot.slane %v2544, %v2551
    %v2554 = vunpack.c.l.s4 1966171168
    %v2555 = vunpack.c.0.s8 %v2554
    %v2556 = vlaneseq
    %v2557 = vshrl.u32 %v2556, 7
    %v2558 = vsub.s32 %v2555, %v2557
    %v2559 = vrot.slane %v2545, %v2558
    %v2560 = vcombine.low %v2552, %v2559
    %v2561 = vcombine.low %v2001, %v2005
    %v2562 = vcombine.low %v2009, %v2013
    %v2563 = vcombine.low %v2017, %v2021
    %v2564 = vcombine.low %v2025, %v2029
    %v2566 = vunpack.c.l.s4 1966171168
    %v2567 = vunpack.c.0.s8 %v2566
    %v2568 = vlaneseq
    %v2569 = vshrl.u32 %v2568, 7
    %v2570 = vsub.s32 %v2567, %v2569
    %v2571 = vrot.slane %v2561, %v2570
    %v2573 = vunpack.c.l.s4 1966171168
    %v2574 = vunpack.c.0.s8 %v2573
    %v2575 = vlaneseq
    %v2576 = vshrl.u32 %v2575, 7
    %v2577 = vsub.s32 %v2574, %v2576
    %v2578 = vrot.slane %v2562, %v2577
    %v2580 = vunpack.c.l.s4 1966171168
    %v2581 = vunpack.c.0.s8 %v2580
    %v2582 = vlaneseq
    %v2583 = vshrl.u32 %v2582, 7
    %v2584 = vsub.s32 %v2581, %v2583
    %v2585 = vrot.slane %v2563, %v2584
    %v2587 = vunpack.c.l.s4 1966171168
    %v2588 = vunpack.c.0.s8 %v2587
    %v2589 = vlaneseq
    %v2590 = vshrl.u32 %v2589, 7
    %v2591 = vsub.s32 %v2588, %v2590
    %v2592 = vrot.slane %v2564, %v2591
    %v2593 = vcombine.low %v2571, %v2578
    %v2594 = vcombine.low %v2585, %v2592
    %v2596 = vunpack.c.l.s4 1966171168
    %v2597 = vunpack.c.0.s8 %v2596
    %v2598 = vlaneseq
    %v2599 = vshrl.u32 %v2598, 7
    %v2600 = vsub.s32 %v2597, %v2599
    %v2601 = vrot.slane %v2593, %v2600
    %v2603 = vunpack.c.l.s4 1966171168
    %v2604 = vunpack.c.0.s8 %v2603
    %v2605 = vlaneseq
    %v2606 = vshrl.u32 %v2605, 7
    %v2607 = vsub.s32 %v2604, %v2606
    %v2608 = vrot.slane %v2594, %v2607
    %v2609 = vcombine.low %v2601, %v2608
    %v2610 = vcombine.low %v2033, %v2037
    %v2611 = vcombine.low %v2041, %v2045
    %v2612 = vcombine.low %v2049, %v2053
    %v2613 = vcombine.low %v2057, %v2061
    %v2615 = vunpack.c.l.s4 1966171168
    %v2616 = vunpack.c.0.s8 %v2615
    %v2617 = vlaneseq
    %v2618 = vshrl.u32 %v2617, 7
    %v2619 = vsub.s32 %v2616, %v2618
    %v2620 = vrot.slane %v2610, %v2619
    %v2622 = vunpack.c.l.s4 1966171168
    %v2623 = vunpack.c.0.s8 %v2622
    %v2624 = vlaneseq
    %v2625 = vshrl.u32 %v2624, 7
    %v2626 = vsub.s32 %v2623, %v2625
    %v2627 = vrot.slane %v2611, %v2626
    %v2629 = vunpack.c.l.s4 1966171168
    %v2630 = vunpack.c.0.s8 %v2629
    %v2631 = vlaneseq
    %v2632 = vshrl.u32 %v2631, 7
    %v2633 = vsub.s32 %v2630, %v2632
    %v2634 = vrot.slane %v2612, %v2633
    %v2636 = vunpack.c.l.s4 1966171168
    %v2637 = vunpack.c.0.s8 %v2636
    %v2638 = vlaneseq
    %v2639 = vshrl.u32 %v2638, 7
    %v2640 = vsub.s32 %v2637, %v2639
    %v2641 = vrot.slane %v2613, %v2640
    %v2642 = vcombine.low %v2620, %v2627
    %v2643 = vcombine.low %v2634, %v2641
    %v2645 = vunpack.c.l.s4 1966171168
    %v2646 = vunpack.c.0.s8 %v2645
    %v2647 = vlaneseq
    %v2648 = vshrl.u32 %v2647, 7
    %v2649 = vsub.s32 %v2646, %v2648
    %v2650 = vrot.slane %v2642, %v2649
    %v2652 = vunpack.c.l.s4 1966171168
    %v2653 = vunpack.c.0.s8 %v2652
    %v2654 = vlaneseq
    %v2655 = vshrl.u32 %v2654, 7
    %v2656 = vsub.s32 %v2653, %v2655
    %v2657 = vrot.slane %v2643, %v2656
    %v2658 = vcombine.low %v2650, %v2657
    %v2659 = vcombine.low %v2065, %v2069
    %v2660 = vcombine.low %v2073, %v2077
    %v2661 = vcombine.low %v2081, %v2085
    %v2662 = vcombine.low %v2089, %v2093
    %v2664 = vunpack.c.l.s4 1966171168
    %v2665 = vunpack.c.0.s8 %v2664
    %v2666 = vlaneseq
    %v2667 = vshrl.u32 %v2666, 7
    %v2668 = vsub.s32 %v2665, %v2667
    %v2669 = vrot.slane %v2659, %v2668
    %v2671 = vunpack.c.l.s4 1966171168
    %v2672 = vunpack.c.0.s8 %v2671
    %v2673 = vlaneseq
    %v2674 = vshrl.u32 %v2673, 7
    %v2675 = vsub.s32 %v2672, %v2674
    %v2676 = vrot.slane %v2660, %v2675
    %v2678 = vunpack.c.l.s4 1966171168
    %v2679 = vunpack.c.0.s8 %v2678
    %v2680 = vlaneseq
    %v2681 = vshrl.u32 %v2680, 7
    %v2682 = vsub.s32 %v2679, %v2681
    %v2683 = vrot.slane %v2661, %v2682
    %v2685 = vunpack.c.l.s4 1966171168
    %v2686 = vunpack.c.0.s8 %v2685
    %v2687 = vlaneseq
    %v2688 = vshrl.u32 %v2687, 7
    %v2689 = vsub.s32 %v2686, %v2688
    %v2690 = vrot.slane %v2662, %v2689
    %v2691 = vcombine.low %v2669, %v2676
    %v2692 = vcombine.low %v2683, %v2690
    %v2694 = vunpack.c.l.s4 1966171168
    %v2695 = vunpack.c.0.s8 %v2694
    %v2696 = vlaneseq
    %v2697 = vshrl.u32 %v2696, 7
    %v2698 = vsub.s32 %v2695, %v2697
    %v2699 = vrot.slane %v2691, %v2698
    %v2701 = vunpack.c.l.s4 1966171168
    %v2702 = vunpack.c.0.s8 %v2701
    %v2703 = vlaneseq
    %v2704 = vshrl.u32 %v2703, 7
    %v2705 = vsub.s32 %v2702, %v2704
    %v2706 = vrot.slane %v2692, %v2705
    %v2707 = vcombine.low %v2699, %v2706
    %v2708 = vcombine.low %v2097, %v2101
    %v2709 = vcombine.low %v2105, %v2109
    %v2710 = vcombine.low %v2113, %v2117
    %v2711 = vcombine.low %v2121, %v2125
    %v2713 = vunpack.c.l.s4 1966171168
    %v2714 = vunpack.c.0.s8 %v2713
    %v2715 = vlaneseq
    %v2716 = vshrl.u32 %v2715, 7
    %v2717 = vsub.s32 %v2714, %v2716
    %v2718 = vrot.slane %v2708, %v2717
    %v2720 = vunpack.c.l.s4 1966171168
    %v2721 = vunpack.c.0.s8 %v2720
    %v2722 = vlaneseq
    %v2723 = vshrl.u32 %v2722, 7
    %v2724 = vsub.s32 %v2721, %v2723
    %v2725 = vrot.slane %v2709, %v2724
    %v2727 = vunpack.c.l.s4 1966171168
    %v2728 = vunpack.c.0.s8 %v2727
    %v2729 = vlaneseq
    %v2730 = vshrl.u32 %v2729, 7
    %v2731 = vsub.s32 %v2728, %v2730
    %v2732 = vrot.slane %v2710, %v2731
    %v2734 = vunpack.c.l.s4 1966171168
    %v2735 = vunpack.c.0.s8 %v2734
    %v2736 = vlaneseq
    %v2737 = vshrl.u32 %v2736, 7
    %v2738 = vsub.s32 %v2735, %v2737
    %v2739 = vrot.slane %v2711, %v2738
    %v2740 = vcombine.low %v2718, %v2725
    %v2741 = vcombine.low %v2732, %v2739
    %v2743 = vunpack.c.l.s4 1966171168
    %v2744 = vunpack.c.0.s8 %v2743
    %v2745 = vlaneseq
    %v2746 = vshrl.u32 %v2745, 7
    %v2747 = vsub.s32 %v2744, %v2746
    %v2748 = vrot.slane %v2740, %v2747
    %v2750 = vunpack.c.l.s4 1966171168
    %v2751 = vunpack.c.0.s8 %v2750
    %v2752 = vlaneseq
    %v2753 = vshrl.u32 %v2752, 7
    %v2754 = vsub.s32 %v2751, %v2753
    %v2755 = vrot.slane %v2741, %v2754
    %v2756 = vcombine.low %v2748, %v2755
    %v2757 = vcombine.low %v2129, %v2133
    %v2758 = vcombine.low %v2137, %v2141
    %v2759 = vcombine.low %v2145, %v2149
    %v2760 = vcombine.low %v2153, %v2157
    %v2762 = vunpack.c.l.s4 1966171168
    %v2763 = vunpack.c.0.s8 %v2762
    %v2764 = vlaneseq
    %v2765 = vshrl.u32 %v2764, 7
    %v2766 = vsub.s32 %v2763, %v2765
    %v2767 = vrot.slane %v2757, %v2766
    %v2769 = vunpack.c.l.s4 1966171168
    %v2770 = vunpack.c.0.s8 %v2769
    %v2771 = vlaneseq
    %v2772 = vshrl.u32 %v2771, 7
    %v2773 = vsub.s32 %v2770, %v2772
    %v2774 = vrot.slane %v2758, %v2773
    %v2776 = vunpack.c.l.s4 1966171168
    %v2777 = vunpack.c.0.s8 %v2776
    %v2778 = vlaneseq
    %v2779 = vshrl.u32 %v2778, 7
    %v2780 = vsub.s32 %v2777, %v2779
    %v2781 = vrot.slane %v2759, %v2780
    %v2783 = vunpack.c.l.s4 1966171168
    %v2784 = vunpack.c.0.s8 %v2783
    %v2785 = vlaneseq
    %v2786 = vshrl.u32 %v2785, 7
    %v2787 = vsub.s32 %v2784, %v2786
    %v2788 = vrot.slane %v2760, %v2787
    %v2789 = vcombine.low %v2767, %v2774
    %v2790 = vcombine.low %v2781, %v2788
    %v2792 = vunpack.c.l.s4 1966171168
    %v2793 = vunpack.c.0.s8 %v2792
    %v2794 = vlaneseq
    %v2795 = vshrl.u32 %v2794, 7
    %v2796 = vsub.s32 %v2793, %v2795
    %v2797 = vrot.slane %v2789, %v2796
    %v2799 = vunpack.c.l.s4 1966171168
    %v2800 = vunpack.c.0.s8 %v2799
    %v2801 = vlaneseq
    %v2802 = vshrl.u32 %v2801, 7
    %v2803 = vsub.s32 %v2800, %v2802
    %v2804 = vrot.slane %v2790, %v2803
    %v2805 = vcombine.low %v2797, %v2804
    %v2806 = vcombine.low %v2161, %v2165
    %v2807 = vcombine.low %v2169, %v2173
    %v2808 = vcombine.low %v2177, %v2181
    %v2809 = vcombine.low %v2185, %v2189
    %v2811 = vunpack.c.l.s4 1966171168
    %v2812 = vunpack.c.0.s8 %v2811
    %v2813 = vlaneseq
    %v2814 = vshrl.u32 %v2813, 7
    %v2815 = vsub.s32 %v2812, %v2814
    %v2816 = vrot.slane %v2806, %v2815
    %v2818 = vunpack.c.l.s4 1966171168
    %v2819 = vunpack.c.0.s8 %v2818
    %v2820 = vlaneseq
    %v2821 = vshrl.u32 %v2820, 7
    %v2822 = vsub.s32 %v2819, %v2821
    %v2823 = vrot.slane %v2807, %v2822
    %v2825 = vunpack.c.l.s4 1966171168
    %v2826 = vunpack.c.0.s8 %v2825
    %v2827 = vlaneseq
    %v2828 = vshrl.u32 %v2827, 7
    %v2829 = vsub.s32 %v2826, %v2828
    %v2830 = vrot.slane %v2808, %v2829
    %v2832 = vunpack.c.l.s4 1966171168
    %v2833 = vunpack.c.0.s8 %v2832
    %v2834 = vlaneseq
    %v2835 = vshrl.u32 %v2834, 7
    %v2836 = vsub.s32 %v2833, %v2835
    %v2837 = vrot.slane %v2809, %v2836
    %v2838 = vcombine.low %v2816, %v2823
    %v2839 = vcombine.low %v2830, %v2837
    %v2841 = vunpack.c.l.s4 1966171168
    %v2842 = vunpack.c.0.s8 %v2841
    %v2843 = vlaneseq
    %v2844 = vshrl.u32 %v2843, 7
    %v2845 = vsub.s32 %v2842, %v2844
    %v2846 = vrot.slane %v2838, %v2845
    %v2848 = vunpack.c.l.s4 1966171168
    %v2849 = vunpack.c.0.s8 %v2848
    %v2850 = vlaneseq
    %v2851 = vshrl.u32 %v2850, 7
    %v2852 = vsub.s32 %v2849, %v2851
    %v2853 = vrot.slane %v2839, %v2852
    %v2854 = vcombine.low %v2846, %v2853
    %v2855 = vcombine.low %v2193, %v2197
    %v2856 = vcombine.low %v2201, %v2205
    %v2857 = vcombine.low %v2209, %v2213
    %v2858 = vcombine.low %v2217, %v2221
    %v2860 = vunpack.c.l.s4 1966171168
    %v2861 = vunpack.c.0.s8 %v2860
    %v2862 = vlaneseq
    %v2863 = vshrl.u32 %v2862, 7
    %v2864 = vsub.s32 %v2861, %v2863
    %v2865 = vrot.slane %v2855, %v2864
    %v2867 = vunpack.c.l.s4 1966171168
    %v2868 = vunpack.c.0.s8 %v2867
    %v2869 = vlaneseq
    %v2870 = vshrl.u32 %v2869, 7
    %v2871 = vsub.s32 %v2868, %v2870
    %v2872 = vrot.slane %v2856, %v2871
    %v2874 = vunpack.c.l.s4 1966171168
    %v2875 = vunpack.c.0.s8 %v2874
    %v2876 = vlaneseq
    %v2877 = vshrl.u32 %v2876, 7
    %v2878 = vsub.s32 %v2875, %v2877
    %v2879 = vrot.slane %v2857, %v2878
    %v2881 = vunpack.c.l.s4 1966171168
    %v2882 = vunpack.c.0.s8 %v2881
    %v2883 = vlaneseq
    %v2884 = vshrl.u32 %v2883, 7
    %v2885 = vsub.s32 %v2882, %v2884
    %v2886 = vrot.slane %v2858, %v2885
    %v2887 = vcombine.low %v2865, %v2872
    %v2888 = vcombine.low %v2879, %v2886
    %v2890 = vunpack.c.l.s4 1966171168
    %v2891 = vunpack.c.0.s8 %v2890
    %v2892 = vlaneseq
    %v2893 = vshrl.u32 %v2892, 7
    %v2894 = vsub.s32 %v2891, %v2893
    %v2895 = vrot.slane %v2887, %v2894
    %v2897 = vunpack.c.l.s4 1966171168
    %v2898 = vunpack.c.0.s8 %v2897
    %v2899 = vlaneseq
    %v2900 = vshrl.u32 %v2899, 7
    %v2901 = vsub.s32 %v2898, %v2900
    %v2902 = vrot.slane %v2888, %v2901
    %v2903 = vcombine.low %v2895, %v2902
    %v2904 = vcombine.low %v2225, %v2229
    %v2905 = vcombine.low %v2233, %v2237
    %v2906 = vcombine.low %v2241, %v2245
    %v2907 = vcombine.low %v2249, %v2253
    %v2909 = vunpack.c.l.s4 1966171168
    %v2910 = vunpack.c.0.s8 %v2909
    %v2911 = vlaneseq
    %v2912 = vshrl.u32 %v2911, 7
    %v2913 = vsub.s32 %v2910, %v2912
    %v2914 = vrot.slane %v2904, %v2913
    %v2916 = vunpack.c.l.s4 1966171168
    %v2917 = vunpack.c.0.s8 %v2916
    %v2918 = vlaneseq
    %v2919 = vshrl.u32 %v2918, 7
    %v2920 = vsub.s32 %v2917, %v2919
    %v2921 = vrot.slane %v2905, %v2920
    %v2923 = vunpack.c.l.s4 1966171168
    %v2924 = vunpack.c.0.s8 %v2923
    %v2925 = vlaneseq
    %v2926 = vshrl.u32 %v2925, 7
    %v2927 = vsub.s32 %v2924, %v2926
    %v2928 = vrot.slane %v2906, %v2927
    %v2930 = vunpack.c.l.s4 1966171168
    %v2931 = vunpack.c.0.s8 %v2930
    %v2932 = vlaneseq
    %v2933 = vshrl.u32 %v2932, 7
    %v2934 = vsub.s32 %v2931, %v2933
    %v2935 = vrot.slane %v2907, %v2934
    %v2936 = vcombine.low %v2914, %v2921
    %v2937 = vcombine.low %v2928, %v2935
    %v2939 = vunpack.c.l.s4 1966171168
    %v2940 = vunpack.c.0.s8 %v2939
    %v2941 = vlaneseq
    %v2942 = vshrl.u32 %v2941, 7
    %v2943 = vsub.s32 %v2940, %v2942
    %v2944 = vrot.slane %v2936, %v2943
    %v2946 = vunpack.c.l.s4 1966171168
    %v2947 = vunpack.c.0.s8 %v2946
    %v2948 = vlaneseq
    %v2949 = vshrl.u32 %v2948, 7
    %v2950 = vsub.s32 %v2947, %v2949
    %v2951 = vrot.slane %v2937, %v2950
    %v2952 = vcombine.low %v2944, %v2951
    %v2953 = vcombine.low %v2257, %v2261
    %v2954 = vcombine.low %v2265, %v2269
    %v2955 = vcombine.low %v2273, %v2277
    %v2956 = vcombine.low %v2281, %v2285
    %v2958 = vunpack.c.l.s4 1966171168
    %v2959 = vunpack.c.0.s8 %v2958
    %v2960 = vlaneseq
    %v2961 = vshrl.u32 %v2960, 7
    %v2962 = vsub.s32 %v2959, %v2961
    %v2963 = vrot.slane %v2953, %v2962
    %v2965 = vunpack.c.l.s4 1966171168
    %v2966 = vunpack.c.0.s8 %v2965
    %v2967 = vlaneseq
    %v2968 = vshrl.u32 %v2967, 7
    %v2969 = vsub.s32 %v2966, %v2968
    %v2970 = vrot.slane %v2954, %v2969
    %v2972 = vunpack.c.l.s4 1966171168
    %v2973 = vunpack.c.0.s8 %v2972
    %v2974 = vlaneseq
    %v2975 = vshrl.u32 %v2974, 7
    %v2976 = vsub.s32 %v2973, %v2975
    %v2977 = vrot.slane %v2955, %v2976
    %v2979 = vunpack.c.l.s4 1966171168
    %v2980 = vunpack.c.0.s8 %v2979
    %v2981 = vlaneseq
    %v2982 = vshrl.u32 %v2981, 7
    %v2983 = vsub.s32 %v2980, %v2982
    %v2984 = vrot.slane %v2956, %v2983
    %v2985 = vcombine.low %v2963, %v2970
    %v2986 = vcombine.low %v2977, %v2984
    %v2988 = vunpack.c.l.s4 1966171168
    %v2989 = vunpack.c.0.s8 %v2988
    %v2990 = vlaneseq
    %v2991 = vshrl.u32 %v2990, 7
    %v2992 = vsub.s32 %v2989, %v2991
    %v2993 = vrot.slane %v2985, %v2992
    %v2995 = vunpack.c.l.s4 1966171168
    %v2996 = vunpack.c.0.s8 %v2995
    %v2997 = vlaneseq
    %v2998 = vshrl.u32 %v2997, 7
    %v2999 = vsub.s32 %v2996, %v2998
    %v3000 = vrot.slane %v2986, %v2999
    %v3001 = vcombine.low %v2993, %v3000
    %v3002 = vcombine.low %v2289, %v2293
    %v3003 = vcombine.low %v2297, %v2301
    %v3004 = vcombine.low %v2305, %v2309
    %v3005 = vcombine.low %v2313, %v2317
    %v3007 = vunpack.c.l.s4 1966171168
    %v3008 = vunpack.c.0.s8 %v3007
    %v3009 = vlaneseq
    %v3010 = vshrl.u32 %v3009, 7
    %v3011 = vsub.s32 %v3008, %v3010
    %v3012 = vrot.slane %v3002, %v3011
    %v3014 = vunpack.c.l.s4 1966171168
    %v3015 = vunpack.c.0.s8 %v3014
    %v3016 = vlaneseq
    %v3017 = vshrl.u32 %v3016, 7
    %v3018 = vsub.s32 %v3015, %v3017
    %v3019 = vrot.slane %v3003, %v3018
    %v3021 = vunpack.c.l.s4 1966171168
    %v3022 = vunpack.c.0.s8 %v3021
    %v3023 = vlaneseq
    %v3024 = vshrl.u32 %v3023, 7
    %v3025 = vsub.s32 %v3022, %v3024
    %v3026 = vrot.slane %v3004, %v3025
    %v3028 = vunpack.c.l.s4 1966171168
    %v3029 = vunpack.c.0.s8 %v3028
    %v3030 = vlaneseq
    %v3031 = vshrl.u32 %v3030, 7
    %v3032 = vsub.s32 %v3029, %v3031
    %v3033 = vrot.slane %v3005, %v3032
    %v3034 = vcombine.low %v3012, %v3019
    %v3035 = vcombine.low %v3026, %v3033
    %v3037 = vunpack.c.l.s4 1966171168
    %v3038 = vunpack.c.0.s8 %v3037
    %v3039 = vlaneseq
    %v3040 = vshrl.u32 %v3039, 7
    %v3041 = vsub.s32 %v3038, %v3040
    %v3042 = vrot.slane %v3034, %v3041
    %v3044 = vunpack.c.l.s4 1966171168
    %v3045 = vunpack.c.0.s8 %v3044
    %v3046 = vlaneseq
    %v3047 = vshrl.u32 %v3046, 7
    %v3048 = vsub.s32 %v3045, %v3047
    %v3049 = vrot.slane %v3035, %v3048
    %v3050 = vcombine.low %v3042, %v3049
    %v3051 = vcombine.low %v2321, %v2325
    %v3052 = vcombine.low %v2329, %v2333
    %v3053 = vcombine.low %v2337, %v2341
    %v3054 = vcombine.low %v2345, %v2349
    %v3056 = vunpack.c.l.s4 1966171168
    %v3057 = vunpack.c.0.s8 %v3056
    %v3058 = vlaneseq
    %v3059 = vshrl.u32 %v3058, 7
    %v3060 = vsub.s32 %v3057, %v3059
    %v3061 = vrot.slane %v3051, %v3060
    %v3063 = vunpack.c.l.s4 1966171168
    %v3064 = vunpack.c.0.s8 %v3063
    %v3065 = vlaneseq
    %v3066 = vshrl.u32 %v3065, 7
    %v3067 = vsub.s32 %v3064, %v3066
    %v3068 = vrot.slane %v3052, %v3067
    %v3070 = vunpack.c.l.s4 1966171168
    %v3071 = vunpack.c.0.s8 %v3070
    %v3072 = vlaneseq
    %v3073 = vshrl.u32 %v3072, 7
    %v3074 = vsub.s32 %v3071, %v3073
    %v3075 = vrot.slane %v3053, %v3074
    %v3077 = vunpack.c.l.s4 1966171168
    %v3078 = vunpack.c.0.s8 %v3077
    %v3079 = vlaneseq
    %v3080 = vshrl.u32 %v3079, 7
    %v3081 = vsub.s32 %v3078, %v3080
    %v3082 = vrot.slane %v3054, %v3081
    %v3083 = vcombine.low %v3061, %v3068
    %v3084 = vcombine.low %v3075, %v3082
    %v3086 = vunpack.c.l.s4 1966171168
    %v3087 = vunpack.c.0.s8 %v3086
    %v3088 = vlaneseq
    %v3089 = vshrl.u32 %v3088, 7
    %v3090 = vsub.s32 %v3087, %v3089
    %v3091 = vrot.slane %v3083, %v3090
    %v3093 = vunpack.c.l.s4 1966171168
    %v3094 = vunpack.c.0.s8 %v3093
    %v3095 = vlaneseq
    %v3096 = vshrl.u32 %v3095, 7
    %v3097 = vsub.s32 %v3094, %v3096
    %v3098 = vrot.slane %v3084, %v3097
    %v3099 = vcombine.low %v3091, %v3098
    %v3100 = vcombine.low %v2353, %v2357
    %v3101 = vcombine.low %v2361, %v2365
    %v3102 = vcombine.low %v2369, %v2373
    %v3103 = vcombine.low %v2377, %v2381
    %v3105 = vunpack.c.l.s4 1966171168
    %v3106 = vunpack.c.0.s8 %v3105
    %v3107 = vlaneseq
    %v3108 = vshrl.u32 %v3107, 7
    %v3109 = vsub.s32 %v3106, %v3108
    %v3110 = vrot.slane %v3100, %v3109
    %v3112 = vunpack.c.l.s4 1966171168
    %v3113 = vunpack.c.0.s8 %v3112
    %v3114 = vlaneseq
    %v3115 = vshrl.u32 %v3114, 7
    %v3116 = vsub.s32 %v3113, %v3115
    %v3117 = vrot.slane %v3101, %v3116
    %v3119 = vunpack.c.l.s4 1966171168
    %v3120 = vunpack.c.0.s8 %v3119
    %v3121 = vlaneseq
    %v3122 = vshrl.u32 %v3121, 7
    %v3123 = vsub.s32 %v3120, %v3122
    %v3124 = vrot.slane %v3102, %v3123
    %v3126 = vunpack.c.l.s4 1966171168
    %v3127 = vunpack.c.0.s8 %v3126
    %v3128 = vlaneseq
    %v3129 = vshrl.u32 %v3128, 7
    %v3130 = vsub.s32 %v3127, %v3129
    %v3131 = vrot.slane %v3103, %v3130
    %v3132 = vcombine.low %v3110, %v3117
    %v3133 = vcombine.low %v3124, %v3131
    %v3135 = vunpack.c.l.s4 1966171168
    %v3136 = vunpack.c.0.s8 %v3135
    %v3137 = vlaneseq
    %v3138 = vshrl.u32 %v3137, 7
    %v3139 = vsub.s32 %v3136, %v3138
    %v3140 = vrot.slane %v3132, %v3139
    %v3142 = vunpack.c.l.s4 1966171168
    %v3143 = vunpack.c.0.s8 %v3142
    %v3144 = vlaneseq
    %v3145 = vshrl.u32 %v3144, 7
    %v3146 = vsub.s32 %v3143, %v3145
    %v3147 = vrot.slane %v3133, %v3146
    %v3148 = vcombine.low %v3140, %v3147
    %v3149 = vcombine.low %v2385, %v2389
    %v3150 = vcombine.low %v2393, %v2397
    %v3151 = vcombine.low %v2401, %v2405
    %v3152 = vcombine.low %v2409, %v2413
    %v3154 = vunpack.c.l.s4 1966171168
    %v3155 = vunpack.c.0.s8 %v3154
    %v3156 = vlaneseq
    %v3157 = vshrl.u32 %v3156, 7
    %v3158 = vsub.s32 %v3155, %v3157
    %v3159 = vrot.slane %v3149, %v3158
    %v3161 = vunpack.c.l.s4 1966171168
    %v3162 = vunpack.c.0.s8 %v3161
    %v3163 = vlaneseq
    %v3164 = vshrl.u32 %v3163, 7
    %v3165 = vsub.s32 %v3162, %v3164
    %v3166 = vrot.slane %v3150, %v3165
    %v3168 = vunpack.c.l.s4 1966171168
    %v3169 = vunpack.c.0.s8 %v3168
    %v3170 = vlaneseq
    %v3171 = vshrl.u32 %v3170, 7
    %v3172 = vsub.s32 %v3169, %v3171
    %v3173 = vrot.slane %v3151, %v3172
    %v3175 = vunpack.c.l.s4 1966171168
    %v3176 = vunpack.c.0.s8 %v3175
    %v3177 = vlaneseq
    %v3178 = vshrl.u32 %v3177, 7
    %v3179 = vsub.s32 %v3176, %v3178
    %v3180 = vrot.slane %v3152, %v3179
    %v3181 = vcombine.low %v3159, %v3166
    %v3182 = vcombine.low %v3173, %v3180
    %v3184 = vunpack.c.l.s4 1966171168
    %v3185 = vunpack.c.0.s8 %v3184
    %v3186 = vlaneseq
    %v3187 = vshrl.u32 %v3186, 7
    %v3188 = vsub.s32 %v3185, %v3187
    %v3189 = vrot.slane %v3181, %v3188
    %v3191 = vunpack.c.l.s4 1966171168
    %v3192 = vunpack.c.0.s8 %v3191
    %v3193 = vlaneseq
    %v3194 = vshrl.u32 %v3193, 7
    %v3195 = vsub.s32 %v3192, %v3194
    %v3196 = vrot.slane %v3182, %v3195
    %v3197 = vcombine.low %v3189, %v3196
    %3198 = vset.pattern.permute.xlu0 0
    %3199 = vperm.xlu0 %3198, %v2462
    %v3200 = vpop.permute.xlu0 %3199
    %3201 = vset.pattern.permute.xlu0 0
    %3202 = vperm.xlu0 %3201, %v2511
    %v3203 = vpop.permute.xlu0 %3202
    %3204 = vset.pattern.permute.xlu0 0
    %3205 = vperm.xlu0 %3204, %v2560
    %v3206 = vpop.permute.xlu0 %3205
    %3207 = vset.pattern.permute.xlu0 0
    %3208 = vperm.xlu0 %3207, %v2609
    %v3209 = vpop.permute.xlu0 %3208
    %3210 = vset.pattern.permute.xlu0 0
    %3211 = vperm.xlu0 %3210, %v2658
    %v3212 = vpop.permute.xlu0 %3211
    %3213 = vset.pattern.permute.xlu0 0
    %3214 = vperm.xlu0 %3213, %v2707
    %v3215 = vpop.permute.xlu0 %3214
    %3216 = vset.pattern.permute.xlu0 0
    %3217 = vperm.xlu0 %3216, %v2756
    %v3218 = vpop.permute.xlu0 %3217
    %3219 = vset.pattern.permute.xlu0 0
    %3220 = vperm.xlu0 %3219, %v2805
    %v3221 = vpop.permute.xlu0 %3220
    %3222 = vset.pattern.permute.xlu0 0
    %3223 = vperm.xlu0 %3222, %v2854
    %v3224 = vpop.permute.xlu0 %3223
    %3225 = vset.pattern.permute.xlu0 0
    %3226 = vperm.xlu0 %3225, %v2903
    %v3227 = vpop.permute.xlu0 %3226
    %3228 = vset.pattern.permute.xlu0 0
    %3229 = vperm.xlu0 %3228, %v2952
    %v3230 = vpop.permute.xlu0 %3229
    %3231 = vset.pattern.permute.xlu0 0
    %3232 = vperm.xlu0 %3231, %v3001
    %v3233 = vpop.permute.xlu0 %3232
    %3234 = vset.pattern.permute.xlu0 0
    %3235 = vperm.xlu0 %3234, %v3050
    %v3236 = vpop.permute.xlu0 %3235
    %3237 = vset.pattern.permute.xlu0 0
    %3238 = vperm.xlu0 %3237, %v3099
    %v3239 = vpop.permute.xlu0 %3238
    %3240 = vset.pattern.permute.xlu0 0
    %3241 = vperm.xlu0 %3240, %v3148
    %v3242 = vpop.permute.xlu0 %3241
    %3243 = vset.pattern.permute.xlu0 0
    %3244 = vperm.xlu0 %3243, %v3197
    %v3245 = vpop.permute.xlu0 %3244
    %v3246 = vlaneseq
    %v3247 = vshrl.u32 %v3246, 7
    %v3248 = vsub.s32 %v1744, %v3247
    %v3249 = vrot.slane %v3200, %v3248
    %v3250 = vlaneseq
    %v3251 = vshrl.u32 %v3250, 7
    %v3252 = vsub.s32 %v1749, %v3251
    %v3253 = vrot.slane %v3203, %v3252
    %v3254 = vsel %vm1754, %v3253, %v3249
    %v3255 = vlaneseq
    %v3256 = vshrl.u32 %v3255, 7
    %v3257 = vsub.s32 %v1756, %v3256
    %v3258 = vrot.slane %v3206, %v3257
    %v3259 = vsel %vm1761, %v3258, %v3254
    %v3260 = vlaneseq
    %v3261 = vshrl.u32 %v3260, 7
    %v3262 = vsub.s32 %v1763, %v3261
    %v3263 = vrot.slane %v3209, %v3262
    %v3264 = vsel %vm1768, %v3263, %v3259
    %v3265 = vlaneseq
    %v3266 = vshrl.u32 %v3265, 7
    %v3267 = vsub.s32 %v1770, %v3266
    %v3268 = vrot.slane %v3212, %v3267
    %v3269 = vsel %vm1775, %v3268, %v3264
    %v3270 = vlaneseq
    %v3271 = vshrl.u32 %v3270, 7
    %v3272 = vsub.s32 %v1777, %v3271
    %v3273 = vrot.slane %v3215, %v3272
    %v3274 = vsel %vm1782, %v3273, %v3269
    %v3275 = vlaneseq
    %v3276 = vshrl.u32 %v3275, 7
    %v3277 = vsub.s32 %v1784, %v3276
    %v3278 = vrot.slane %v3218, %v3277
    %v3279 = vsel %vm1789, %v3278, %v3274
    %v3280 = vlaneseq
    %v3281 = vshrl.u32 %v3280, 7
    %v3282 = vsub.s32 %v1791, %v3281
    %v3283 = vrot.slane %v3221, %v3282
    %v3284 = vsel %vm1796, %v3283, %v3279
    %v3285 = vlaneseq
    %v3286 = vshrl.u32 %v3285, 7
    %v3287 = vsub.s32 %v1798, %v3286
    %v3288 = vrot.slane %v3224, %v3287
    %v3289 = vsel %vm1803, %v3288, %v3284
    %v3290 = vlaneseq
    %v3291 = vshrl.u32 %v3290, 7
    %v3292 = vsub.s32 %v1805, %v3291
    %v3293 = vrot.slane %v3227, %v3292
    %v3294 = vsel %vm1810, %v3293, %v3289
    %v3295 = vlaneseq
    %v3296 = vshrl.u32 %v3295, 7
    %v3297 = vsub.s32 %v1812, %v3296
    %v3298 = vrot.slane %v3230, %v3297
    %v3299 = vsel %vm1817, %v3298, %v3294
    %v3300 = vlaneseq
    %v3301 = vshrl.u32 %v3300, 7
    %v3302 = vsub.s32 %v1819, %v3301
    %v3303 = vrot.slane %v3233, %v3302
    %v3304 = vsel %vm1824, %v3303, %v3299
    %v3305 = vlaneseq
    %v3306 = vshrl.u32 %v3305, 7
    %v3307 = vsub.s32 %v1826, %v3306
    %v3308 = vrot.slane %v3236, %v3307
    %v3309 = vsel %vm1831, %v3308, %v3304
    %v3310 = vlaneseq
    %v3311 = vshrl.u32 %v3310, 7
    %v3312 = vsub.s32 %v1833, %v3311
    %v3313 = vrot.slane %v3239, %v3312
    %v3314 = vsel %vm1838, %v3313, %v3309
    %v3315 = vlaneseq
    %v3316 = vshrl.u32 %v3315, 7
    %v3317 = vsub.s32 %v1840, %v3316
    %v3318 = vrot.slane %v3242, %v3317
    %v3319 = vsel %vm1845, %v3318, %v3314
    %v3320 = vlaneseq
    %v3321 = vshrl.u32 %v3320, 7
    %v3322 = vsub.s32 %v1847, %v3321
    %v3323 = vrot.slane %v3245, %v3322
    %v3324 = vsel %vm1852, %v3323, %v3319
    %v3326 = vunpack.c.l.s4 1966171168
    %v3327 = vunpack.c.0.s8 %v3326
    %v3328 = vlaneseq
    %v3329 = vshrl.u32 %v3328, 7
    %v3330 = vsub.s32 %v3327, %v3329
    %v3331 = vrot.slane %v3324, %v3330
    %v3333 = vunpack.c.l.s4 1966171168
    %v3334 = vunpack.c.0.s8 %v3333
    %v3335 = vlaneseq
    %v3336 = vshrl.u32 %v3335, 7
    %v3337 = vsub.s32 %v3334, %v3336
    %v3338 = vrot.slane %v3331, %v3337
    %v3340 = vmul.f32 %v237, %v3338
    %v3341 = vadd.f32 %v1869, %v3340
    %s3342 = sadd.s32 0, 0
    %v3343 = vlaneseq
    %v3344 = vshrl.u32 %v3343, 7
    %s3345 = smul.u32 %s3342, 128
    %v3346 = vmul.u32 %v3344, 128
    %v3347 = vstv %s3345
    %v3348 = vadd.s32 %v3347, %v3346
    %v3349 = vadd.s32 %v3348, %v1744
    %vm3350 = vcmp.lt.s32.totalorder %v3349, 8
    %v3351 = vsel %vm3350, %v3341, 0.0
    %v3352 = vld [vmem:[#allocation2] sm:$0x1]
    %v3353 = vadd.f32 %v3352, %v3351
    %3354 = vst [vmem:[#allocation2] sm:$0x1] %v3353
    // Predicated region
    $region18: #{tpu_custom_call.1} parent=1 // pred_check
      %p3355 = pneg %p103
    $region19: #{tpu_custom_call.1} parent=1 // pred_check_branch
      %3357 = sbr.rel (%p3355) target = $region21
    $region20: #{tpu_custom_call.1} parent=1 // pred_region
      %v3358 = vld [vmem:[#allocation2] sm:$0x1]
      %vm3359 = vcmask 1040384
      %v3360 = vsel %vm3359, %v3358, 0.0
      %3361 = vadd.xlane.f32.xlu0 %v3360
      %v3362 = vpop.xlane.xlu0 %3361
      %v3363 = vrot.slane %v3362, 4
      %v3364 = vadd.f32 %v3362, %v3363
      %v3365 = vrot.slane %v3364, 2
      %v3366 = vadd.f32 %v3364, %v3365
      %v3367 = vrot.slane %v3366, 1
      %v3368 = vadd.f32 %v3366, %v3367
      %s3369 = vtos %v3368
      %s3370 = scalar_lea.smem [#allocation3], 0
      %3371 = sst [smem:[%s3370]] %s3369
    $region21: #{tpu_custom_call.1} parent=1 // pred_fallthru
      _
    // Predicated region
    $region22: #{tpu_custom_call.1} parent=1 // pred_check
      _
    $region23: #{tpu_custom_call.1} parent=1 // pred_check_branch
      %3373 = sbr.rel (0) target = $region25
    $region24: #{tpu_custom_call.1} parent=1 // pred_region
      %s3375 = ssub.s32 16, 16
      %3376 = vsyncadd [#allocation4], %s3375
      %3379 = dma.smem_to_hbm [#allocation3], 16, %s3, [#allocation4]
    $region25: #{tpu_custom_call.1} parent=1 // pred_fallthru
      _
    // Predicated region
    $region26: #{tpu_custom_call.1} parent=1 // pred_check
      _
    $region27: #{tpu_custom_call.1} parent=1 // pred_check_branch
      %3381 = sbr.rel (0) target = $region29
    $region28: #{tpu_custom_call.1} parent=1 // pred_region
      %3382 = dma.done [#allocation4], 16
    $region29: #{tpu_custom_call.1} parent=1 // pred_fallthru
      _
    %3383 = sfence
    %3384 = vsyncpa [#allocation4], 1

</llo_original>
